<compile_context>
chip_gen: v6e
topology: v6e:2x2x1
jax: 0.10.0
libtpu: 0.0.40
codegen_flags: <defaults>
</compile_context>

<pallas_src>
import jax
import jax.numpy as jnp
from jax import lax
from jax.experimental import pallas as pl
from jax.experimental.pallas import tpu as pltpu

LN_EPS = 1e-5  # torch.nn.LayerNorm default


def _silu_f32(x):
    # SiLU with a single EUP transcendental: sigmoid(x) = 0.5 * (tanh(x/2) + 1).
    return x * (0.5 * jnp.tanh(0.5 * x) + 0.5)


def _emb_kernel(emb_ref, w_scale_ref, b_scale_ref, w_shift_ref, b_shift_ref,
                scale1_ref, shift_ref):
    # Whole arrays resident in VMEM; runs once. Emits (1 + scale) and shift.
    e = _silu_f32(emb_ref[...].astype(jnp.float32))                       # (B, E)
    scale1_ref[...] = 1.0 + (jnp.dot(e, w_scale_ref[...],
                                     preferred_element_type=jnp.float32)
                             + b_scale_ref[...])                          # (B, D)
    shift_ref[...] = (jnp.dot(e, w_shift_ref[...],
                              preferred_element_type=jnp.float32)
                      + b_shift_ref[...])                                 # (B, D)


def _film_out_kernel(h_ref, scale1_ref, shift_ref, gamma_ref, beta_ref,
                     w_out_ref, b_out_ref, o_ref):
    # Per-step blocks: h_ref (1, tT, D); scale1/shift (1, 1, D); gamma/beta/b_out (1, D);
    # w_out (D, D) bf16.
    hb = h_ref[0].astype(jnp.float32)                                     # (tT, D)

    # --- LayerNorm over last dim (f32) ---
    mean = jnp.mean(hb, axis=-1, keepdims=True)
    var = jnp.mean(jnp.square(hb - mean), axis=-1, keepdims=True)
    normed = (hb - mean) * lax.rsqrt(var + LN_EPS)
    normed = normed * gamma_ref[...] + beta_ref[...]

    # --- FiLM-style modulation: LN(h) * (1 + scale) + shift ---
    hmod = normed * scale1_ref[0] + shift_ref[0]                          # (tT, D)

    # --- out_layers: SiLU -> Dropout(identity) -> Linear(D, D) on the MXU (bf16 x bf16 -> f32) ---
    hs = _silu_f32(hmod)
    out = jnp.dot(hs.astype(jnp.bfloat16), w_out_ref[...],
                  preferred_element_type=jnp.float32) + b_out_ref[...]    # (tT, D)

    o_ref[0] = out.astype(o_ref.dtype)


def _choose_row_tile(T):
    """Largest multiple-of-8 divisor of T, capped at 512 rows per block."""
    if T % 8 != 0:
        return T  # fall back to one block covering all rows (full-dim block is legal)
    best = 8
    for cand in range(8, min(T, 512) + 1, 8):
        if T % cand == 0:
            best = cand
    return best


def stylization_block(h, emb, params):
    """h: (B, T, D) f32, emb: (B, E) f32. Returns (B, T, D) in h.dtype."""
    B, T, D = h.shape

    w_emb = params["w_emb"]          # (E, 2D)  stored as (in_features, out_features)
    b_emb = params["b_emb"]          # (1, 2D)
    gamma = params["gamma"]          # (1, D)
    beta = params["beta"]            # (1, D)
    w_out = params["w_out"]          # (D, D)
    b_out = params["b_out"]          # (1, D)

    # Static split of the emb projection so no kernel ever slices along the lane axis.
    w_scale, w_shift = w_emb[:, :D], w_emb[:, D:]
    b_scale, b_shift = b_emb[:, :D], b_emb[:, D:]

    # --- Kernel 1: emb path (SiLU -> Linear), computed once per call ---
    scale1, shift = pl.pallas_call(
        _emb_kernel,
        out_shape=(jax.ShapeDtypeStruct((B, D), jnp.float32),
                   jax.ShapeDtypeStruct((B, D), jnp.float32)),
    )(emb, w_scale, b_scale, w_shift, b_shift)
    scale1 = scale1.reshape(B, 1, D)
    shift = shift.reshape(B, 1, D)

    # bf16 weight for the MXU; cast once here instead of every grid step.
    w_out_bf16 = w_out.astype(jnp.bfloat16)

    tT = _choose_row_tile(T)
    grid = (B, T // tT)

    # NOTE(v7x): if VMEM-tight (large D), the constant-index weight blocks below could be
    # single-buffered via pipeline_mode=pl.Buffered(1); not needed at these sizes.
    return pl.pallas_call(
        _film_out_kernel,
        out_shape=jax.ShapeDtypeStruct((B, T, D), h.dtype),
        grid=grid,
        in_specs=[
            pl.BlockSpec((1, tT, D), lambda b, t: (b, t, 0)),   # h row tile
            pl.BlockSpec((1, 1, D), lambda b, t: (b, 0, 0)),    # 1 + scale (per batch)
            pl.BlockSpec((1, 1, D), lambda b, t: (b, 0, 0)),    # shift     (per batch)
            pl.BlockSpec((1, D), lambda b, t: (0, 0)),          # gamma
            pl.BlockSpec((1, D), lambda b, t: (0, 0)),          # beta
            pl.BlockSpec((D, D), lambda b, t: (0, 0)),          # w_out (bf16)
            pl.BlockSpec((1, D), lambda b, t: (0, 0)),          # b_out
        ],
        out_specs=pl.BlockSpec((1, tT, D), lambda b, t: (b, t, 0)),
        compiler_params=pltpu.CompilerParams(
            # No reduction axis -> both grid axes parallel (megacore sharding on v7x).
            dimension_semantics=("parallel", "parallel")),
    )(h, scale1, shift, gamma, beta, w_out_bf16, b_out)


def make_params(key, latent_dim, time_embed_dim, zero_out=True):
    """Deterministic parameter init.

    emb_layers Linear: torch default U(-1/sqrt(in), 1/sqrt(in)).
    LayerNorm: gamma=1, beta=0.
    out Linear: zero_module -> zeros (set zero_out=False for a nonzero check).
    Weights are stored as (in_features, out_features).
    """
    k1, k2, k3, k4 = jax.random.split(key, 4)
    bound_e = 1.0 / jnp.sqrt(time_embed_dim)
    bound_o = 1.0 / jnp.sqrt(latent_dim)
    w_emb = jax.random.uniform(k1, (time_embed_dim, 2 * latent_dim),
                               jnp.float32, -bound_e, bound_e)
    b_emb = jax.random.uniform(k2, (1, 2 * latent_dim),
                               jnp.float32, -bound_e, bound_e)
    if zero_out:
        w_out = jnp.zeros((latent_dim, latent_dim), jnp.float32)
        b_out = jnp.zeros((1, latent_dim), jnp.float32)
    else:
        w_out = jax.random.uniform(k3, (latent_dim, latent_dim),
                                   jnp.float32, -bound_o, bound_o)
        b_out = jax.random.uniform(k4, (1, latent_dim),
                                   jnp.float32, -bound_o, bound_o)
    return {
        "w_emb": w_emb, "b_emb": b_emb,
        "gamma": jnp.ones((1, latent_dim), jnp.float32),
        "beta": jnp.zeros((1, latent_dim), jnp.float32),
        "w_out": w_out, "b_out": b_out,
    }


def reference_forward(h, emb, p):
    """Pure-JAX f32 reference (mirrors the PyTorch forward, dropout in eval mode)."""
    e = jax.nn.silu(emb)
    emb_out = e @ p["w_emb"] + p["b_emb"]                 # (B, 2D)
    D = h.shape[-1]
    scale, shift = emb_out[:, :D], emb_out[:, D:]
    mean = h.mean(-1, keepdims=True)
    var = ((h - mean) ** 2).mean(-1, keepdims=True)
    normed = (h - mean) / jnp.sqrt(var + LN_EPS) * p["gamma"] + p["beta"]
    hmod = normed * (1 + scale[:, None, :]) + shift[:, None, :]
    hs = jax.nn.silu(hmod)
    return hs @ p["w_out"] + p["b_out"]


if __name__ == "__main__":
    # Lane-dense, row-tileable but still small shapes:
    # batch=2, seq=512 (-> two 256-row tiles per batch), latent_dim=128, time_embed_dim=128.
    B, T, D, E = 2, 512, 128, 128

    key = jax.random.PRNGKey(0)
    kh, ke, kp = jax.random.split(key, 3)
    h = jax.random.normal(kh, (B, T, D), jnp.float32)
    emb = jax.random.normal(ke, (B, E), jnp.float32)

    fwd = jax.jit(stylization_block)

    # Correctness check with a non-zero out Linear (so the result is non-trivial).
    # Tolerance is relaxed slightly because the out GEMM uses bf16 MXU operands
    # (f32 accumulation); everything else is f32.
    params_chk = make_params(kp, D, E, zero_out=False)
    out_chk = jax.block_until_ready(fwd(h, emb, params_chk))
    ref_chk = reference_forward(h, emb, params_chk)
    assert out_chk.shape == (B, T, D)
    assert jnp.allclose(out_chk, ref_chk, atol=2e-2, rtol=2e-2), (
        "mismatch vs reference, max abs diff = "
        f"{float(jnp.max(jnp.abs(out_chk - ref_chk)))}")

    # Faithful module parameters: out Linear is zero_module'd -> output is all zeros.
    params = make_params(kp, D, E, zero_out=True)
    out = jax.block_until_ready(fwd(h, emb, params))
    assert out.shape == (B, T, D)
    assert jnp.allclose(out, jnp.zeros_like(out))

    print("KERNEL_OK")
</pallas_src>

<mosaic_0001>
module attributes {stable_mosaic.version = 11 : i64} {
  func.func @_emb_kernel(%arg0: memref<2x128xf32, #tpu.memory_space<vmem>>, %arg1: memref<128x128xf32, #tpu.memory_space<vmem>>, %arg2: memref<1x128xf32, #tpu.memory_space<vmem>>, %arg3: memref<128x128xf32, #tpu.memory_space<vmem>>, %arg4: memref<1x128xf32, #tpu.memory_space<vmem>>, %arg5: memref<2x128xf32, #tpu.memory_space<vmem>>, %arg6: memref<2x128xf32, #tpu.memory_space<vmem>>) attributes {dimension_semantics = [], scalar_prefetch = 0 : i64, scratch_operands = 0 : i64, tpu.core_type = #tpu.core_type<tc>} {
    %c0 = arith.constant 0 : index
    %c0_0 = arith.constant 0 : index
    %0 = vector.load %arg0[%c0, %c0_0] : memref<2x128xf32, #tpu.memory_space<vmem>>, vector<2x128xf32>
    %cst = arith.constant 5.000000e-01 : f32
    %1 = vector.broadcast %cst : f32 to vector<2x128xf32>
    %2 = arith.mulf %1, %0 : vector<2x128xf32>
    %3 = math.tanh %2 : vector<2x128xf32>
    %cst_1 = arith.constant 5.000000e-01 : f32
    %4 = vector.broadcast %cst_1 : f32 to vector<2x128xf32>
    %5 = arith.mulf %4, %3 : vector<2x128xf32>
    %cst_2 = arith.constant 5.000000e-01 : f32
    %6 = vector.broadcast %cst_2 : f32 to vector<2x128xf32>
    %7 = arith.addf %5, %6 : vector<2x128xf32>
    %8 = arith.mulf %0, %7 : vector<2x128xf32>
    %c0_3 = arith.constant 0 : index
    %c0_4 = arith.constant 0 : index
    %9 = vector.load %arg1[%c0_3, %c0_4] : memref<128x128xf32, #tpu.memory_space<vmem>>, vector<128x128xf32>
    %cst_5 = arith.constant dense<0.000000e+00> : vector<2x128xf32>
    %10 = tpu.matmul %8, %9, %cst_5 {dimension_numbers = #tpu.dot_dimension_numbers<[1], [0], [0], [1], [0, 0, 1, 1], [], []>} : vector<2x128xf32>, vector<128x128xf32>, vector<2x128xf32> -> vector<2x128xf32>
    %c0_6 = arith.constant 0 : index
    %c0_7 = arith.constant 0 : index
    %11 = vector.load %arg2[%c0_6, %c0_7] : memref<1x128xf32, #tpu.memory_space<vmem>>, vector<1x128xf32>
    %12 = vector.broadcast %11 : vector<1x128xf32> to vector<2x128xf32>
    %13 = arith.addf %10, %12 : vector<2x128xf32>
    %cst_8 = arith.constant 1.000000e+00 : f32
    %14 = vector.broadcast %cst_8 : f32 to vector<2x128xf32>
    %15 = arith.addf %14, %13 : vector<2x128xf32>
    %c0_9 = arith.constant 0 : index
    %c0_10 = arith.constant 0 : index
    %16 = vector.load %arg5[%c0_9, %c0_10] : memref<2x128xf32, #tpu.memory_space<vmem>>, vector<2x128xf32>
    tpu.vector_store %arg5[%c0_9, %c0_10], %15 {strides = array<i32>} : memref<2x128xf32, #tpu.memory_space<vmem>>, vector<2x128xf32>,
    %c0_11 = arith.constant 0 : index
    %c0_12 = arith.constant 0 : index
    %17 = vector.load %arg3[%c0_11, %c0_12] : memref<128x128xf32, #tpu.memory_space<vmem>>, vector<128x128xf32>
    %cst_13 = arith.constant dense<0.000000e+00> : vector<2x128xf32>
    %18 = tpu.matmul %8, %17, %cst_13 {dimension_numbers = #tpu.dot_dimension_numbers<[1], [0], [0], [1], [0, 0, 1, 1], [], []>} : vector<2x128xf32>, vector<128x128xf32>, vector<2x128xf32> -> vector<2x128xf32>
    %c0_14 = arith.constant 0 : index
    %c0_15 = arith.constant 0 : index
    %19 = vector.load %arg4[%c0_14, %c0_15] : memref<1x128xf32, #tpu.memory_space<vmem>>, vector<1x128xf32>
    %20 = vector.broadcast %19 : vector<1x128xf32> to vector<2x128xf32>
    %21 = arith.addf %18, %20 : vector<2x128xf32>
    %c0_16 = arith.constant 0 : index
    %c0_17 = arith.constant 0 : index
    %22 = vector.load %arg6[%c0_16, %c0_17] : memref<2x128xf32, #tpu.memory_space<vmem>>, vector<2x128xf32>
    tpu.vector_store %arg6[%c0_16, %c0_17], %21 {strides = array<i32>} : memref<2x128xf32, #tpu.memory_space<vmem>>, vector<2x128xf32>,
    return
  }
}

module attributes {stable_mosaic.version = 11 : i64} {
  func.func @_film_out_kernel(%arg0: i32, %arg1: i32, %arg2: memref<1x512x128xf32, #tpu.memory_space<vmem>>, %arg3: memref<1x1x128xf32, #tpu.memory_space<vmem>>, %arg4: memref<1x1x128xf32, #tpu.memory_space<vmem>>, %arg5: memref<1x128xf32, #tpu.memory_space<vmem>>, %arg6: memref<1x128xf32, #tpu.memory_space<vmem>>, %arg7: memref<128x128xbf16, #tpu.memory_space<vmem>>, %arg8: memref<1x128xf32, #tpu.memory_space<vmem>>, %arg9: memref<1x512x128xf32, #tpu.memory_space<vmem>>) attributes {dimension_semantics = [#tpu.dimension_semantics<parallel>, #tpu.dimension_semantics<parallel>], iteration_bounds = array<i64: 2, 1>, scalar_prefetch = 0 : i64, scratch_operands = 0 : i64, tpu.core_type = #tpu.core_type<tc>, window_params = [{transform_indices = @transform_0, window_bounds = array<i64: 1, 512, 128>}, {transform_indices = @transform_1, window_bounds = array<i64: 1, 1, 128>}, {transform_indices = @transform_2, window_bounds = array<i64: 1, 1, 128>}, {pipeline_mode = #tpu.pipeline_mode<synchronous>, transform_indices = @transform_3, window_bounds = array<i64: 1, 128>}, {pipeline_mode = #tpu.pipeline_mode<synchronous>, transform_indices = @transform_4, window_bounds = array<i64: 1, 128>}, {pipeline_mode = #tpu.pipeline_mode<synchronous>, transform_indices = @transform_5, window_bounds = array<i64: 128, 128>}, {pipeline_mode = #tpu.pipeline_mode<synchronous>, transform_indices = @transform_6, window_bounds = array<i64: 1, 128>}, {transform_indices = @transform_7, window_bounds = array<i64: 1, 512, 128>}]} {
    %c0 = arith.constant 0 : index
    %c0_0 = arith.constant 0 : index
    %c0_1 = arith.constant 0 : index
    %0 = vector.load %arg2[%c0, %c0_0, %c0_1] : memref<1x512x128xf32, #tpu.memory_space<vmem>>, vector<1x512x128xf32>
    %1 = vector.shape_cast %0 : vector<1x512x128xf32> to vector<512x128xf32>
    %cst = arith.constant dense<0.000000e+00> : vector<512xf32>
    %2 = vector.multi_reduction <add>, %1, %cst [1] : vector<512x128xf32> to vector<512xf32>
    %3 = vector.shape_cast %2 : vector<512xf32> to vector<512x1xf32>
    %cst_2 = arith.constant 1.280000e+02 : f32
    %4 = vector.broadcast %cst_2 : f32 to vector<512x1xf32>
    %5 = arith.divf %3, %4 : vector<512x1xf32>
    %6 = vector.broadcast %5 : vector<512x1xf32> to vector<512x128xf32>
    %7 = arith.subf %1, %6 : vector<512x128xf32>
    %8 = arith.mulf %7, %7 : vector<512x128xf32>
    %cst_3 = arith.constant dense<0.000000e+00> : vector<512xf32>
    %9 = vector.multi_reduction <add>, %8, %cst_3 [1] : vector<512x128xf32> to vector<512xf32>
    %10 = vector.shape_cast %9 : vector<512xf32> to vector<512x1xf32>
    %cst_4 = arith.constant 1.280000e+02 : f32
    %11 = vector.broadcast %cst_4 : f32 to vector<512x1xf32>
    %12 = arith.divf %10, %11 : vector<512x1xf32>
    %13 = vector.broadcast %5 : vector<512x1xf32> to vector<512x128xf32>
    %14 = arith.subf %1, %13 : vector<512x128xf32>
    %cst_5 = arith.constant 9.99999974E-6 : f32
    %15 = vector.broadcast %cst_5 : f32 to vector<512x1xf32>
    %16 = arith.addf %12, %15 : vector<512x1xf32>
    %17 = math.rsqrt %16 : vector<512x1xf32>
    %18 = vector.broadcast %17 : vector<512x1xf32> to vector<512x128xf32>
    %19 = arith.mulf %14, %18 : vector<512x128xf32>
    %c0_6 = arith.constant 0 : index
    %c0_7 = arith.constant 0 : index
    %20 = vector.load %arg5[%c0_6, %c0_7] : memref<1x128xf32, #tpu.memory_space<vmem>>, vector<1x128xf32>
    %21 = vector.broadcast %20 : vector<1x128xf32> to vector<512x128xf32>
    %22 = arith.mulf %19, %21 : vector<512x128xf32>
    %c0_8 = arith.constant 0 : index
    %c0_9 = arith.constant 0 : index
    %23 = vector.load %arg6[%c0_8, %c0_9] : memref<1x128xf32, #tpu.memory_space<vmem>>, vector<1x128xf32>
    %24 = vector.broadcast %23 : vector<1x128xf32> to vector<512x128xf32>
    %25 = arith.addf %22, %24 : vector<512x128xf32>
    %c0_10 = arith.constant 0 : index
    %c0_11 = arith.constant 0 : index
    %c0_12 = arith.constant 0 : index
    %26 = vector.load %arg3[%c0_10, %c0_11, %c0_12] : memref<1x1x128xf32, #tpu.memory_space<vmem>>, vector<1x1x128xf32>
    %27 = vector.shape_cast %26 : vector<1x1x128xf32> to vector<1x128xf32>
    %28 = vector.broadcast %27 : vector<1x128xf32> to vector<512x128xf32>
    %29 = arith.mulf %25, %28 : vector<512x128xf32>
    %c0_13 = arith.constant 0 : index
    %c0_14 = arith.constant 0 : index
    %c0_15 = arith.constant 0 : index
    %30 = vector.load %arg4[%c0_13, %c0_14, %c0_15] : memref<1x1x128xf32, #tpu.memory_space<vmem>>, vector<1x1x128xf32>
    %31 = vector.shape_cast %30 : vector<1x1x128xf32> to vector<1x128xf32>
    %32 = vector.broadcast %31 : vector<1x128xf32> to vector<512x128xf32>
    %33 = arith.addf %29, %32 : vector<512x128xf32>
    %cst_16 = arith.constant 5.000000e-01 : f32
    %34 = vector.broadcast %cst_16 : f32 to vector<512x128xf32>
    %35 = arith.mulf %34, %33 : vector<512x128xf32>
    %36 = math.tanh %35 : vector<512x128xf32>
    %cst_17 = arith.constant 5.000000e-01 : f32
    %37 = vector.broadcast %cst_17 : f32 to vector<512x128xf32>
    %38 = arith.mulf %37, %36 : vector<512x128xf32>
    %cst_18 = arith.constant 5.000000e-01 : f32
    %39 = vector.broadcast %cst_18 : f32 to vector<512x128xf32>
    %40 = arith.addf %38, %39 : vector<512x128xf32>
    %41 = arith.mulf %33, %40 : vector<512x128xf32>
    %42 = arith.truncf %41 : vector<512x128xf32> to vector<512x128xbf16>
    %c0_19 = arith.constant 0 : index
    %c0_20 = arith.constant 0 : index
    %43 = vector.load %arg7[%c0_19, %c0_20] : memref<128x128xbf16, #tpu.memory_space<vmem>>, vector<128x128xbf16>
    %cst_21 = arith.constant dense<0.000000e+00> : vector<512x128xf32>
    %44 = tpu.matmul %42, %43, %cst_21 {dimension_numbers = #tpu.dot_dimension_numbers<[1], [0], [0], [1], [0, 0, 1, 1], [], []>} : vector<512x128xbf16>, vector<128x128xbf16>, vector<512x128xf32> -> vector<512x128xf32>
    %c0_22 = arith.constant 0 : index
    %c0_23 = arith.constant 0 : index
    %45 = vector.load %arg8[%c0_22, %c0_23] : memref<1x128xf32, #tpu.memory_space<vmem>>, vector<1x128xf32>
    %46 = vector.broadcast %45 : vector<1x128xf32> to vector<512x128xf32>
    %47 = arith.addf %44, %46 : vector<512x128xf32>
    %c0_24 = arith.constant 0 : index
    %c0_25 = arith.constant 0 : index
    %c0_26 = arith.constant 0 : index
    %48 = vector.load %arg9[%c0_24, %c0_25, %c0_26] : memref<1x512x128xf32, #tpu.memory_space<vmem>>, vector<1x512x128xf32>
    %49 = vector.shape_cast %48 : vector<1x512x128xf32> to vector<512x128xf32>
    %50 = vector.shape_cast %47 : vector<512x128xf32> to vector<1x512x128xf32>
    tpu.vector_store %arg9[%c0_24, %c0_25, %c0_26], %50 {strides = array<i32>} : memref<1x512x128xf32, #tpu.memory_space<vmem>>, vector<1x512x128xf32>,
    return
  }
  func.func @transform_0(%arg0: i32, %arg1: i32) -> (i32, i32, i32) {
    %c0_i32 = arith.constant 0 : i32
    %c0_i32_0 = arith.constant 0 : i32
    return %arg0, %arg1, %c0_i32 : i32, i32, i32
  }
  func.func @transform_1(%arg0: i32, %arg1: i32) -> (i32, i32, i32) {
    %c0_i32 = arith.constant 0 : i32
    %c0_i32_0 = arith.constant 0 : i32
    %c0_i32_1 = arith.constant 0 : i32
    return %arg0, %c0_i32, %c0_i32_0 : i32, i32, i32
  }
  func.func @transform_2(%arg0: i32, %arg1: i32) -> (i32, i32, i32) {
    %c0_i32 = arith.constant 0 : i32
    %c0_i32_0 = arith.constant 0 : i32
    %c0_i32_1 = arith.constant 0 : i32
    return %arg0, %c0_i32, %c0_i32_0 : i32, i32, i32
  }
  func.func @transform_3(%arg0: i32, %arg1: i32) -> (i32, i32) {
    %c0_i32 = arith.constant 0 : i32
    %c0_i32_0 = arith.constant 0 : i32
    %c0_i32_1 = arith.constant 0 : i32
    return %c0_i32, %c0_i32_0 : i32, i32
  }
  func.func @transform_4(%arg0: i32, %arg1: i32) -> (i32, i32) {
    %c0_i32 = arith.constant 0 : i32
    %c0_i32_0 = arith.constant 0 : i32
    %c0_i32_1 = arith.constant 0 : i32
    return %c0_i32, %c0_i32_0 : i32, i32
  }
  func.func @transform_5(%arg0: i32, %arg1: i32) -> (i32, i32) {
    %c0_i32 = arith.constant 0 : i32
    %c0_i32_0 = arith.constant 0 : i32
    %c0_i32_1 = arith.constant 0 : i32
    return %c0_i32, %c0_i32_0 : i32, i32
  }
  func.func @transform_6(%arg0: i32, %arg1: i32) -> (i32, i32) {
    %c0_i32 = arith.constant 0 : i32
    %c0_i32_0 = arith.constant 0 : i32
    %c0_i32_1 = arith.constant 0 : i32
    return %c0_i32, %c0_i32_0 : i32, i32
  }
  func.func @transform_7(%arg0: i32, %arg1: i32) -> (i32, i32, i32) {
    %c0_i32 = arith.constant 0 : i32
    %c0_i32_0 = arith.constant 0 : i32
    return %arg0, %arg1, %c0_i32 : i32, i32, i32
  }
}

</mosaic_0001>

<llo_original>
// kernel: stylization_block.2
$region0: #{stylization_block.2}
  #allocation0 [shape = 'u32[]', space=smem, size = 0x4, offset = 0x4, fixed_abs, tag = 'smem constant byte address 0x4 - core index']
  #allocation1 [shape = 'u32[144,128]{1,0:T(1,128)}', space=vmem, size = 0x12000, scoped, tag = 'internal scratch']
  %s0 = inlined_call_operand.vmem [shape: f32[2,128], index: 0, kind: input, shape index: {}]
  %s1 = inlined_call_operand.vmem [shape: f32[128,128], index: 1, kind: input, shape index: {}]
  %s2 = inlined_call_operand.vmem [shape: f32[1,128], index: 2, kind: input, shape index: {}]
  %s3 = inlined_call_operand.vmem [shape: f32[128,128], index: 3, kind: input, shape index: {}]
  %s4 = inlined_call_operand.vmem [shape: f32[1,128], index: 4, kind: input, shape index: {}]
  %s5 = inlined_call_operand.vmem [shape: f32[2,128], index: 5, kind: output, shape index: {0}]
  %s6 = inlined_call_operand.vmem [shape: f32[2,128], index: 6, kind: output, shape index: {1}]
  %7 = xla_tuple %s5, %s6
  %s8 = sld [smem:[#allocation0]]
  $region38: #{stylization_block.2} parent=0
    _
  %s10 = ssub.s32 1, %s8
  %s11 = scalar_select 0, %s10, %s8
  // Predicated region
  $region2: #{stylization_block.2} parent=0 // pred_check
    _
  $region3: #{stylization_block.2} parent=0 // pred_check_branch
    %13 = sbr.rel (0) target = $region5
  $region4: #{stylization_block.2} parent=0 // pred_region
    _
  $region5: #{stylization_block.2} parent=0 // pred_fallthru
    _
  // Predicated region
  $region6: #{stylization_block.2} parent=0 // pred_check
    _
  $region7: #{stylization_block.2} parent=0 // pred_check_branch
    %15 = sbr.rel (0) target = $region9
  $region8: #{stylization_block.2} parent=0 // pred_region
    _
  $region9: #{stylization_block.2} parent=0 // pred_fallthru
    _
  // Predicated region
  $region10: #{stylization_block.2} parent=0 // pred_check
    _
  $region11: #{stylization_block.2} parent=0 // pred_check_branch
    %17 = sbr.rel (0) target = $region13
  $region12: #{stylization_block.2} parent=0 // pred_region
    _
  $region13: #{stylization_block.2} parent=0 // pred_fallthru
    _
  // Predicated region
  $region14: #{stylization_block.2} parent=0 // pred_check
    _
  $region15: #{stylization_block.2} parent=0 // pred_check_branch
    %19 = sbr.rel (0) target = $region17
  $region16: #{stylization_block.2} parent=0 // pred_region
    _
  $region17: #{stylization_block.2} parent=0 // pred_fallthru
    _
  // Predicated region
  $region18: #{stylization_block.2} parent=0 // pred_check
    _
  $region19: #{stylization_block.2} parent=0 // pred_check_branch
    %21 = sbr.rel (0) target = $region21
  $region20: #{stylization_block.2} parent=0 // pred_region
    _
  $region21: #{stylization_block.2} parent=0 // pred_fallthru
    _
  %v22 = vld [vmem:[%s0] sm:$0x3]
  %v23 = vmul.f32 %v22, 0.5
  %v24 = vtanh.pop %v23
  %v25 = vmul.f32 %v24, 0.5
  %v26 = vadd.f32 %v25, 0.5
  %v27 = vmul.f32 %v22, %v26
  %v28 = vld [vmem:[%s1] sm:$0xff]
  %v29 = vld [vmem:[%s1 + $0x8] sm:$0xff]
  %v30 = vld [vmem:[%s1 + $0x10] sm:$0xff]
  %v31 = vld [vmem:[%s1 + $0x18] sm:$0xff]
  %v32 = vld [vmem:[%s1 + $0x20] sm:$0xff]
  %v33 = vld [vmem:[%s1 + $0x28] sm:$0xff]
  %v34 = vld [vmem:[%s1 + $0x30] sm:$0xff]
  %v35 = vld [vmem:[%s1 + $0x38] sm:$0xff]
  %v36 = vld [vmem:[%s1 + $0x40] sm:$0xff]
  %v37 = vld [vmem:[%s1 + $0x48] sm:$0xff]
  %v38 = vld [vmem:[%s1 + $0x50] sm:$0xff]
  %v39 = vld [vmem:[%s1 + $0x58] sm:$0xff]
  %v40 = vld [vmem:[%s1 + $0x60] sm:$0xff]
  %v41 = vld [vmem:[%s1 + $0x68] sm:$0xff]
  %v42 = vld [vmem:[%s1 + $0x70] sm:$0xff]
  %v43 = vld [vmem:[%s1 + $0x78] sm:$0xff]
  %v44 = vld [vmem:[%s2] sm:$0x1]
  %v46 = vlaneseq
  %v47 = vshrl.u32 %v46, 7
  %v48 = vsub.s32 0, %v47
  %v49 = vrot.slane %v44, %v48
  %51 = vmatprep.subr.mxu0 0.0
  %52 = vmatpush1.msra.mxu0 %v43
  %53 = vmatprep.subr.mxu0 0.0
  %54 = vmatpush1.msra.mxu0 %v42
  %55 = vmatprep.subr.mxu0 0.0
  %56 = vmatpush1.msra.mxu0 %v41
  %57 = vmatprep.subr.mxu0 0.0
  %58 = vmatpush1.msra.mxu0 %v40
  %59 = vmatprep.subr.mxu0 0.0
  %60 = vmatpush1.msra.mxu0 %v39
  %61 = vmatprep.subr.mxu0 0.0
  %62 = vmatpush1.msra.mxu0 %v38
  %63 = vmatprep.subr.mxu0 0.0
  %64 = vmatpush1.msra.mxu0 %v37
  %65 = vmatprep.subr.mxu0 0.0
  %66 = vmatpush1.msra.mxu0 %v36
  %67 = vmatprep.subr.mxu0 0.0
  %68 = vmatpush1.msra.mxu0 %v35
  %69 = vmatprep.subr.mxu0 0.0
  %70 = vmatpush1.msra.mxu0 %v34
  %71 = vmatprep.subr.mxu0 0.0
  %72 = vmatpush1.msra.mxu0 %v33
  %73 = vmatprep.subr.mxu0 0.0
  %74 = vmatpush1.msra.mxu0 %v32
  %75 = vmatprep.subr.mxu0 0.0
  %76 = vmatpush1.msra.mxu0 %v31
  %77 = vmatprep.subr.mxu0 0.0
  %78 = vmatpush1.msra.mxu0 %v30
  %79 = vmatprep.subr.mxu0 0.0
  %80 = vmatpush1.msra.mxu0 %v29
  %81 = vmatprep.subr.mxu0 0.0
  %82 = vmatpush1.msra.mxu0 %v28
  %83 = vmatprep.subr.mxu0 0.0
  %84 = vmatpush2.msra.mxu0 0.0
  %85 = vmatprep.subr.mxu0 0.0
  %86 = vmatpush2.msra.mxu0 0.0
  %87 = vmatprep.subr.mxu0 0.0
  %88 = vmatpush2.msra.mxu0 0.0
  %89 = vmatprep.subr.mxu0 0.0
  %90 = vmatpush2.msra.mxu0 0.0
  %91 = vmatprep.subr.mxu0 0.0
  %92 = vmatpush2.msra.mxu0 0.0
  %93 = vmatprep.subr.mxu0 0.0
  %94 = vmatpush2.msra.mxu0 0.0
  %95 = vmatprep.subr.mxu0 0.0
  %96 = vmatpush2.msra.mxu0 0.0
  %97 = vmatprep.subr.mxu0 0.0
  %98 = vmatpush2.msra.mxu0 0.0
  %99 = vmatprep.subr.mxu0 0.0
  %100 = vmatpush2.msra.mxu0 0.0
  %101 = vmatprep.subr.mxu0 0.0
  %102 = vmatpush2.msra.mxu0 0.0
  %103 = vmatprep.subr.mxu0 0.0
  %104 = vmatpush2.msra.mxu0 0.0
  %105 = vmatprep.subr.mxu0 0.0
  %106 = vmatpush2.msra.mxu0 0.0
  %107 = vmatprep.subr.mxu0 0.0
  %108 = vmatpush2.msra.mxu0 0.0
  %109 = vmatprep.subr.mxu0 0.0
  %110 = vmatpush2.msra.mxu0 0.0
  %111 = vmatprep.subr.mxu0 0.0
  %112 = vmatpush2.msra.mxu0 0.0
  %113 = vmatprep.subr.mxu0 0.0
  %114 = vmatpush2.msra.mxu0 0.0
  %115 = vmatprep.mubr.f32.mxu0 0.0
  %116 = vmatmul.mubr.f32.gmra.mxu0 %v27
  %v117 = vpop.f32.mrf.mxu0
  %v118 = vadd.f32 %v49, %v117
  %v119 = vpop.f32.mrf.mxu0
  %120 = vdwg.mxu0
  %v121 = vadd.f32 %v118, 1.0
  %122 = vst [vmem:[%s5] sm:$0x3] %v121
  %v123 = vld [vmem:[%s3] sm:$0xff]
  %v124 = vld [vmem:[%s3 + $0x8] sm:$0xff]
  %v125 = vld [vmem:[%s3 + $0x10] sm:$0xff]
  %v126 = vld [vmem:[%s3 + $0x18] sm:$0xff]
  %v127 = vld [vmem:[%s3 + $0x20] sm:$0xff]
  %v128 = vld [vmem:[%s3 + $0x28] sm:$0xff]
  %v129 = vld [vmem:[%s3 + $0x30] sm:$0xff]
  %v130 = vld [vmem:[%s3 + $0x38] sm:$0xff]
  %v131 = vld [vmem:[%s3 + $0x40] sm:$0xff]
  %v132 = vld [vmem:[%s3 + $0x48] sm:$0xff]
  %v133 = vld [vmem:[%s3 + $0x50] sm:$0xff]
  %v134 = vld [vmem:[%s3 + $0x58] sm:$0xff]
  %v135 = vld [vmem:[%s3 + $0x60] sm:$0xff]
  %v136 = vld [vmem:[%s3 + $0x68] sm:$0xff]
  %v137 = vld [vmem:[%s3 + $0x70] sm:$0xff]
  %v138 = vld [vmem:[%s3 + $0x78] sm:$0xff]
  %v139 = vld [vmem:[%s4] sm:$0x1]
  %v141 = vlaneseq
  %v142 = vshrl.u32 %v141, 7
  %v143 = vsub.s32 0, %v142
  %v144 = vrot.slane %v139, %v143
  %146 = vmatprep.subr.mxu0 0.0
  %147 = vmatpush1.msra.mxu0 %v138
  %148 = vmatprep.subr.mxu0 0.0
  %149 = vmatpush1.msra.mxu0 %v137
  %150 = vmatprep.subr.mxu0 0.0
  %151 = vmatpush1.msra.mxu0 %v136
  %152 = vmatprep.subr.mxu0 0.0
  %153 = vmatpush1.msra.mxu0 %v135
  %154 = vmatprep.subr.mxu0 0.0
  %155 = vmatpush1.msra.mxu0 %v134
  %156 = vmatprep.subr.mxu0 0.0
  %157 = vmatpush1.msra.mxu0 %v133
  %158 = vmatprep.subr.mxu0 0.0
  %159 = vmatpush1.msra.mxu0 %v132
  %160 = vmatprep.subr.mxu0 0.0
  %161 = vmatpush1.msra.mxu0 %v131
  %162 = vmatprep.subr.mxu0 0.0
  %163 = vmatpush1.msra.mxu0 %v130
  %164 = vmatprep.subr.mxu0 0.0
  %165 = vmatpush1.msra.mxu0 %v129
  %166 = vmatprep.subr.mxu0 0.0
  %167 = vmatpush1.msra.mxu0 %v128
  %168 = vmatprep.subr.mxu0 0.0
  %169 = vmatpush1.msra.mxu0 %v127
  %170 = vmatprep.subr.mxu0 0.0
  %171 = vmatpush1.msra.mxu0 %v126
  %172 = vmatprep.subr.mxu0 0.0
  %173 = vmatpush1.msra.mxu0 %v125
  %174 = vmatprep.subr.mxu0 0.0
  %175 = vmatpush1.msra.mxu0 %v124
  %176 = vmatprep.subr.mxu0 0.0
  %177 = vmatpush1.msra.mxu0 %v123
  %178 = vmatprep.subr.mxu0 0.0
  %179 = vmatpush2.msra.mxu0 0.0
  %180 = vmatprep.subr.mxu0 0.0
  %181 = vmatpush2.msra.mxu0 0.0
  %182 = vmatprep.subr.mxu0 0.0
  %183 = vmatpush2.msra.mxu0 0.0
  %184 = vmatprep.subr.mxu0 0.0
  %185 = vmatpush2.msra.mxu0 0.0
  %186 = vmatprep.subr.mxu0 0.0
  %187 = vmatpush2.msra.mxu0 0.0
  %188 = vmatprep.subr.mxu0 0.0
  %189 = vmatpush2.msra.mxu0 0.0
  %190 = vmatprep.subr.mxu0 0.0
  %191 = vmatpush2.msra.mxu0 0.0
  %192 = vmatprep.subr.mxu0 0.0
  %193 = vmatpush2.msra.mxu0 0.0
  %194 = vmatprep.subr.mxu0 0.0
  %195 = vmatpush2.msra.mxu0 0.0
  %196 = vmatprep.subr.mxu0 0.0
  %197 = vmatpush2.msra.mxu0 0.0
  %198 = vmatprep.subr.mxu0 0.0
  %199 = vmatpush2.msra.mxu0 0.0
  %200 = vmatprep.subr.mxu0 0.0
  %201 = vmatpush2.msra.mxu0 0.0
  %202 = vmatprep.subr.mxu0 0.0
  %203 = vmatpush2.msra.mxu0 0.0
  %204 = vmatprep.subr.mxu0 0.0
  %205 = vmatpush2.msra.mxu0 0.0
  %206 = vmatprep.subr.mxu0 0.0
  %207 = vmatpush2.msra.mxu0 0.0
  %208 = vmatprep.subr.mxu0 0.0
  %209 = vmatpush2.msra.mxu0 0.0
  %210 = vmatprep.mubr.f32.mxu0 0.0
  %211 = vmatmul.mubr.f32.gmra.mxu0 %v27
  %v212 = vpop.f32.mrf.mxu0
  %v213 = vadd.f32 %v144, %v212
  %v214 = vpop.f32.mrf.mxu0
  %215 = vdwg.mxu0
  %216 = vst [vmem:[%s6] sm:$0x3] %v213
  // Predicated region
  $region22: #{stylization_block.2} parent=0 // pred_check
    _
  $region23: #{stylization_block.2} parent=0 // pred_check_branch
    %218 = sbr.rel (0) target = $region25
  $region24: #{stylization_block.2} parent=0 // pred_region
    _
  $region25: #{stylization_block.2} parent=0 // pred_fallthru
    _
  // Predicated region
  $region26: #{stylization_block.2} parent=0 // pred_check
    _
  $region27: #{stylization_block.2} parent=0 // pred_check_branch
    %220 = sbr.rel (0) target = $region29
  $region28: #{stylization_block.2} parent=0 // pred_region
    _
  $region29: #{stylization_block.2} parent=0 // pred_fallthru
    _
  // Predicated region
  $region30: #{stylization_block.2} parent=0 // pred_check
    _
  $region31: #{stylization_block.2} parent=0 // pred_check_branch
    %222 = sbr.rel (0) target = $region33
  $region32: #{stylization_block.2} parent=0 // pred_region
    _
  $region33: #{stylization_block.2} parent=0 // pred_fallthru
    _
  // Predicated region
  $region34: #{stylization_block.2} parent=0 // pred_check
    _
  $region35: #{stylization_block.2} parent=0 // pred_check_branch
    %224 = sbr.rel (0) target = $region37
  $region36: #{stylization_block.2} parent=0 // pred_region
    _
  $region37: #{stylization_block.2} parent=0 // pred_fallthru
    _

// kernel: stylization_block.3
$region0: #{stylization_block.3}
  #allocation0 [shape = 'u32[]', space=smem, size = 0x4, offset = 0x4, fixed_abs, tag = 'smem constant byte address 0x4 - core index']
  #allocation1 [shape = 'u32[144,128]{1,0:T(1,128)}', space=vmem, size = 0x12000, scoped, tag = 'internal scratch']
  %s0 = inlined_call_operand.hbm [shape: f32[2,512,128], index: 0, kind: input, shape index: {}]
  %s1 = inlined_call_operand.vmem [shape: f32[2,1,128], index: 1, kind: input, shape index: {}]
  %s2 = inlined_call_operand.vmem [shape: f32[2,1,128], index: 2, kind: input, shape index: {}]
  %s3 = inlined_call_operand.vmem [shape: f32[1,128], index: 3, kind: input, shape index: {}]
  %s4 = inlined_call_operand.vmem [shape: f32[1,128], index: 4, kind: input, shape index: {}]
  %s5 = inlined_call_operand.vmem [shape: bf16[128,128], index: 5, kind: input, shape index: {}]
  %s6 = inlined_call_operand.vmem [shape: f32[1,128], index: 6, kind: input, shape index: {}]
  %s7 = inlined_call_operand.hbm [shape: f32[2,512,128], index: 7, kind: output, shape index: {}]
  %s8 = sld [smem:[#allocation0]]
  $region65: #{stylization_block.3} parent=0
    _
  %s10 = ssub.s32 1, %s8
  %s11 = scalar_select 0, %s10, %s8
  $region1: #{stylization_block.3} parent=0
    #allocation2 [shape = 'u8[524288]{0}', space=vmem, size = 0x80000, scoped, tag = 'input window, operand 0']
    #allocation3 [shape = 's32[2]{0}', space=sflag, size = 0x8, scoped, tag = 'scoped memory for stylization_block.3']
    #allocation4 [shape = 's32[2]{0}', space=sflag, size = 0x8, scoped, tag = 'scoped memory for stylization_block.3']
    #allocation5 [shape = 'u8[524288]{0}', space=vmem, size = 0x80000, scoped, tag = 'output window, operand 0']
    %12 = vsyncpa [#allocation3], 0
    %s13 = scalar_lea.sflag [#allocation3], 1
    %14 = vsyncpa %s13, 0
    %15 = vsyncpa [#allocation4], 0
    %s16 = scalar_lea.sflag [#allocation4], 1
    %17 = vsyncpa %s16, 0
    loop: start=0, step=1, limit=4
    $region2: #{stylization_block.3} parent=1 // loop_pre_header
      _
    $region3: #{stylization_block.3} parent=1 // loop_header
      %s19 = sphi 0, %s23
      %p20 = scmp.ge.s32.totalorder %s19, 4
      %s26 = sphi 0, %s38
      %s27 = sphi 0, %s34
      %s28 = sphi 0, %s26
      %s29 = sphi 0, %s27
      %s30 = sphi 0, %s28
      %s31 = sphi 0, %s29
      %s43 = sphi 0, %s45
      %s46 = sphi 0, %s43
      %s47 = sphi 0, %s46
      %s63 = sphi 0, %s47
      %s69 = sphi 0, %s71
      %s72 = sphi 0, %s69
      %s73 = sphi 0, %s72
      %s89 = sphi 0, %s73
      %s95 = sphi 0, %s97
      %s98 = sphi 0, %s95
      %s99 = sphi 0, %s98
      %s115 = sphi 0, %s99
      %s119 = sphi 0, %s119
      %s121 = sphi 0, %s119
      %s122 = sphi 0, %s121
      %s136 = sphi 0, %s122
      %s140 = sphi 0, %s140
      %s142 = sphi 0, %s140
      %s143 = sphi 0, %s142
      %s157 = sphi 0, %s143
      %s161 = sphi 0, %s161
      %s163 = sphi 0, %s161
      %s164 = sphi 0, %s163
      %s178 = sphi 0, %s164
      %s182 = sphi 0, %s182
      %s184 = sphi 0, %s182
      %s185 = sphi 0, %s184
      %s199 = sphi 0, %s185
      %s207 = sphi 0, %s209
      %s210 = sphi 0, %s207
      %s211 = sphi 0, %s210
      %s227 = sphi 0, %s211
    $region4: #{stylization_block.3} parent=1 // loop_header_branch
      %22 = sbr.rel (%p20) target = $region8
    $region5: #{stylization_block.3} parent=1 // loop_body
      %s24 = ssub.s32 %s19, 1
      %s25 = ssub.s32 %s19, 2
      %s32 = sadd.s32 1, %s27
      %p33 = scmp.ge.s32.totalorder %s32, 1
      %s34 = scalar_select %p33, 0, %s32
      %s35 = sadd.s32 1, %s26
      %s36 = scalar_select %p33, %s35, %s26
      %p37 = scmp.ge.s32.totalorder %s36, 2
      %s38 = scalar_select %p37, 0, %s36
      %s39 = ssub.s32 %s26, %s38
      %s40 = ssub.s32 %s27, %s34
      %s41 = sor.u32 %s39, %s40
      %p42 = scmp.eq.s32.totalorder %s41, 0
      %s44 = sadd.s32 %s43, 1
      %s45 = scalar_select %p42, %s43, %s44
      %p48 = pneg %p42
      %p49 = scmp.eq.s32.totalorder %s19, 1
      %p50 = por %p48, %p49
      %p51 = scmp.ne.s32.totalorder %s43, %s46
      %p52 = scmp.eq.s32.totalorder %s19, 0
      %p53 = por %p51, %p52
      %p54 = scmp.ne.s32.totalorder %s43, %s46
      %p55 = scmp.eq.s32.totalorder %s24, 1
      %p56 = por %p54, %p55
      %p57 = scmp.ne.s32.totalorder %s46, %s47
      %p58 = scmp.eq.s32.totalorder %s24, 0
      %p59 = por %p57, %p58
      %p60 = scmp.ne.s32.totalorder %s46, %s47
      %p61 = scmp.eq.s32.totalorder %s25, 1
      %p62 = por %p60, %p61
      %p64 = scmp.ne.s32.totalorder %s47, %s63
      %p65 = scmp.eq.s32.totalorder %s25, 0
      %p66 = por %p64, %p65
      %s67 = ssub.s32 %s26, %s38
      %p68 = scmp.eq.s32.totalorder %s67, 0
      %s70 = sadd.s32 %s69, 1
      %s71 = scalar_select %p68, %s69, %s70
      %p74 = pneg %p68
      %p75 = scmp.eq.s32.totalorder %s19, 1
      %p76 = por %p74, %p75
      %p77 = scmp.ne.s32.totalorder %s69, %s72
      %p78 = scmp.eq.s32.totalorder %s19, 0
      %p79 = por %p77, %p78
      %p80 = scmp.ne.s32.totalorder %s69, %s72
      %p81 = scmp.eq.s32.totalorder %s24, 1
      %p82 = por %p80, %p81
      %p83 = scmp.ne.s32.totalorder %s72, %s73
      %p84 = scmp.eq.s32.totalorder %s24, 0
      %p85 = por %p83, %p84
      %p86 = scmp.ne.s32.totalorder %s72, %s73
      %p87 = scmp.eq.s32.totalorder %s25, 1
      %p88 = por %p86, %p87
      %p90 = scmp.ne.s32.totalorder %s73, %s89
      %p91 = scmp.eq.s32.totalorder %s25, 0
      %p92 = por %p90, %p91
      %s93 = ssub.s32 %s26, %s38
      %p94 = scmp.eq.s32.totalorder %s93, 0
      %s96 = sadd.s32 %s95, 1
      %s97 = scalar_select %p94, %s95, %s96
      %p100 = pneg %p94
      %p101 = scmp.eq.s32.totalorder %s19, 1
      %p102 = por %p100, %p101
      %p103 = scmp.ne.s32.totalorder %s95, %s98
      %p104 = scmp.eq.s32.totalorder %s19, 0
      %p105 = por %p103, %p104
      %p106 = scmp.ne.s32.totalorder %s95, %s98
      %p107 = scmp.eq.s32.totalorder %s24, 1
      %p108 = por %p106, %p107
      %p109 = scmp.ne.s32.totalorder %s98, %s99
      %p110 = scmp.eq.s32.totalorder %s24, 0
      %p111 = por %p109, %p110
      %p112 = scmp.ne.s32.totalorder %s98, %s99
      %p113 = scmp.eq.s32.totalorder %s25, 1
      %p114 = por %p112, %p113
      %p116 = scmp.ne.s32.totalorder %s99, %s115
      %p117 = scmp.eq.s32.totalorder %s25, 0
      %p118 = por %p116, %p117
      %s120 = sadd.s32 %s119, 1
      %p123 = scmp.eq.s32.totalorder %s19, 1
      %p124 = scmp.ne.s32.totalorder %s119, %s121
      %p125 = scmp.eq.s32.totalorder %s19, 0
      %p126 = por %p124, %p125
      %p127 = scmp.ne.s32.totalorder %s119, %s121
      %p128 = scmp.eq.s32.totalorder %s24, 1
      %p129 = por %p127, %p128
      %p130 = scmp.ne.s32.totalorder %s121, %s122
      %p131 = scmp.eq.s32.totalorder %s24, 0
      %p132 = por %p130, %p131
      %p133 = scmp.ne.s32.totalorder %s121, %s122
      %p134 = scmp.eq.s32.totalorder %s25, 1
      %p135 = por %p133, %p134
      %p137 = scmp.ne.s32.totalorder %s122, %s136
      %p138 = scmp.eq.s32.totalorder %s25, 0
      %p139 = por %p137, %p138
      %s141 = sadd.s32 %s140, 1
      %p144 = scmp.eq.s32.totalorder %s19, 1
      %p145 = scmp.ne.s32.totalorder %s140, %s142
      %p146 = scmp.eq.s32.totalorder %s19, 0
      %p147 = por %p145, %p146
      %p148 = scmp.ne.s32.totalorder %s140, %s142
      %p149 = scmp.eq.s32.totalorder %s24, 1
      %p150 = por %p148, %p149
      %p151 = scmp.ne.s32.totalorder %s142, %s143
      %p152 = scmp.eq.s32.totalorder %s24, 0
      %p153 = por %p151, %p152
      %p154 = scmp.ne.s32.totalorder %s142, %s143
      %p155 = scmp.eq.s32.totalorder %s25, 1
      %p156 = por %p154, %p155
      %p158 = scmp.ne.s32.totalorder %s143, %s157
      %p159 = scmp.eq.s32.totalorder %s25, 0
      %p160 = por %p158, %p159
      %s162 = sadd.s32 %s161, 1
      %p165 = scmp.eq.s32.totalorder %s19, 1
      %p166 = scmp.ne.s32.totalorder %s161, %s163
      %p167 = scmp.eq.s32.totalorder %s19, 0
      %p168 = por %p166, %p167
      %p169 = scmp.ne.s32.totalorder %s161, %s163
      %p170 = scmp.eq.s32.totalorder %s24, 1
      %p171 = por %p169, %p170
      %p172 = scmp.ne.s32.totalorder %s163, %s164
      %p173 = scmp.eq.s32.totalorder %s24, 0
      %p174 = por %p172, %p173
      %p175 = scmp.ne.s32.totalorder %s163, %s164
      %p176 = scmp.eq.s32.totalorder %s25, 1
      %p177 = por %p175, %p176
      %p179 = scmp.ne.s32.totalorder %s164, %s178
      %p180 = scmp.eq.s32.totalorder %s25, 0
      %p181 = por %p179, %p180
      %s183 = sadd.s32 %s182, 1
      %p186 = scmp.eq.s32.totalorder %s19, 1
      %p187 = scmp.ne.s32.totalorder %s182, %s184
      %p188 = scmp.eq.s32.totalorder %s19, 0
      %p189 = por %p187, %p188
      %p190 = scmp.ne.s32.totalorder %s182, %s184
      %p191 = scmp.eq.s32.totalorder %s24, 1
      %p192 = por %p190, %p191
      %p193 = scmp.ne.s32.totalorder %s184, %s185
      %p194 = scmp.eq.s32.totalorder %s24, 0
      %p195 = por %p193, %p194
      %p196 = scmp.ne.s32.totalorder %s184, %s185
      %p197 = scmp.eq.s32.totalorder %s25, 1
      %p198 = por %p196, %p197
      %p200 = scmp.ne.s32.totalorder %s185, %s199
      %p201 = scmp.eq.s32.totalorder %s25, 0
      %p202 = por %p200, %p201
      %s203 = ssub.s32 %s26, %s38
      %s204 = ssub.s32 %s27, %s34
      %s205 = sor.u32 %s203, %s204
      %p206 = scmp.eq.s32.totalorder %s205, 0
      %s208 = sadd.s32 %s207, 1
      %s209 = scalar_select %p206, %s207, %s208
      %p212 = pneg %p206
      %p213 = scmp.eq.s32.totalorder %s19, 1
      %p214 = por %p212, %p213
      %p215 = scmp.ne.s32.totalorder %s207, %s210
      %p216 = scmp.eq.s32.totalorder %s19, 0
      %p217 = por %p215, %p216
      %p218 = scmp.ne.s32.totalorder %s207, %s210
      %p219 = scmp.eq.s32.totalorder %s24, 1
      %p220 = por %p218, %p219
      %p221 = scmp.ne.s32.totalorder %s210, %s211
      %p222 = scmp.eq.s32.totalorder %s24, 0
      %p223 = por %p221, %p222
      %p224 = scmp.ne.s32.totalorder %s210, %s211
      %p225 = scmp.eq.s32.totalorder %s25, 1
      %p226 = por %p224, %p225
      %p228 = scmp.ne.s32.totalorder %s211, %s227
      %p229 = scmp.eq.s32.totalorder %s25, 0
      %p230 = por %p228, %p229
      %p231 = scmp.le.s32.totalorder 1, %s19
      %p232 = scmp.lt.s32.totalorder %s19, 3
      %p233 = pnand %p231, %p232
      %p234 = pneg %p233
      // Predicated region
      $region9: #{stylization_block.3} parent=5 // pred_check
        _
      $region10: #{stylization_block.3} parent=5 // pred_check_branch
        %236 = sbr.rel (%p233) target = $region12
      $region11: #{stylization_block.3} parent=5 // pred_region
        %s237 = ssub.s32 %s19, 1
        // Predicated region
        $region13: #{stylization_block.3} parent=11 // pred_check
          %p238 = pneg %p132
        $region14: #{stylization_block.3} parent=11 // pred_check_branch
          %240 = sbr.rel (%p238) target = $region16
        $region15: #{stylization_block.3} parent=11 // pred_region
          _
        $region16: #{stylization_block.3} parent=11 // pred_fallthru
          _
        // Predicated region
        $region17: #{stylization_block.3} parent=11 // pred_check
          %p241 = pneg %p153
        $region18: #{stylization_block.3} parent=11 // pred_check_branch
          %243 = sbr.rel (%p241) target = $region20
        $region19: #{stylization_block.3} parent=11 // pred_region
          _
        $region20: #{stylization_block.3} parent=11 // pred_fallthru
          _
        // Predicated region
        $region21: #{stylization_block.3} parent=11 // pred_check
          %p244 = pneg %p174
        $region22: #{stylization_block.3} parent=11 // pred_check_branch
          %246 = sbr.rel (%p244) target = $region24
        $region23: #{stylization_block.3} parent=11 // pred_region
          _
        $region24: #{stylization_block.3} parent=11 // pred_fallthru
          _
        // Predicated region
        $region25: #{stylization_block.3} parent=11 // pred_check
          %p247 = pneg %p195
        $region26: #{stylization_block.3} parent=11 // pred_check_branch
          %249 = sbr.rel (%p247) target = $region28
        $region27: #{stylization_block.3} parent=11 // pred_region
          _
        $region28: #{stylization_block.3} parent=11 // pred_fallthru
          _
      $region12: #{stylization_block.3} parent=5 // pred_fallthru
        _
      %p250 = scmp.lt.s32.totalorder %s19, 2
      // Predicated region
      $region29: #{stylization_block.3} parent=5 // pred_check
        %p251 = pneg %p250
      $region30: #{stylization_block.3} parent=5 // pred_check_branch
        %253 = sbr.rel (%p251) target = $region32
      $region31: #{stylization_block.3} parent=5 // pred_region
        // Predicated region
        $region33: #{stylization_block.3} parent=31 // pred_check
          %p254 = pneg %p53
        $region34: #{stylization_block.3} parent=31 // pred_check_branch
          %256 = sbr.rel (%p254) target = $region36
        $region35: #{stylization_block.3} parent=31 // pred_region
          %s257 = sand.u32 %s43, 1
          %s258 = scalar_lea.sflag [#allocation3], %s257
          %s259 = sand.u32 %s43, 1
          %s260 = smul.addr %s259, 512
          %s261 = scalar_lea.vmem [#allocation2], %s260
          %s262 = smul.u32 64, %s27
          %s264 = ssub.s32 8192, 8192
          %265 = vsyncadd %s258, %s264
          %s266 = smul.addr %s26, 64
          %s267 = sadd.s32 %s262, %s266
          %s268 = smul.addr %s267, 128
          %s269 = scalar_lea.hbm %s0, %s268
          %s270 = sshll.u32 %s261, 4
          %s271 = int_to_ptr.vmem [resolvable:$true] %s270
          %276 = dma.hbm_to_vmem [thread:$0]  %s269, 8192, %s271, %s258, 128, 128, 8
        $region36: #{stylization_block.3} parent=31 // pred_fallthru
          _
        // Predicated region
        $region37: #{stylization_block.3} parent=31 // pred_check
          %p277 = pneg %p79
        $region38: #{stylization_block.3} parent=31 // pred_check_branch
          %279 = sbr.rel (%p277) target = $region40
        $region39: #{stylization_block.3} parent=31 // pred_region
          %p280 = scmp.lt.s32.totalorder %s26, 1
          %s281 = scalar_select %p280, %s26, 1
          %s282 = scalar_lea.vmem %s1, %s281
        $region40: #{stylization_block.3} parent=31 // pred_fallthru
          _
        // Predicated region
        $region41: #{stylization_block.3} parent=31 // pred_check
          %p283 = pneg %p105
        $region42: #{stylization_block.3} parent=31 // pred_check_branch
          %285 = sbr.rel (%p283) target = $region44
        $region43: #{stylization_block.3} parent=31 // pred_region
          %p286 = scmp.lt.s32.totalorder %s26, 1
          %s287 = scalar_select %p286, %s26, 1
          %s288 = scalar_lea.vmem %s2, %s287
        $region44: #{stylization_block.3} parent=31 // pred_fallthru
          _
      $region32: #{stylization_block.3} parent=5 // pred_fallthru
        _
      %p289 = scmp.le.s32.totalorder 1, %s19
      %p290 = scmp.lt.s32.totalorder %s19, 3
      %p291 = pnand %p289, %p290
      %p292 = pneg %p291
      // Predicated region
      $region45: #{stylization_block.3} parent=5 // pred_check
        _
      $region46: #{stylization_block.3} parent=5 // pred_check_branch
        %294 = sbr.rel (%p291) target = $region48
      $region47: #{stylization_block.3} parent=5 // pred_region
        %s295 = ssub.s32 %s19, 1
        %s296 = sand.u32 %s46, 1
        %s297 = scalar_lea.sflag [#allocation3], %s296
        %s298 = sand.u32 %s46, 1
        %s299 = smul.addr %s298, 512
        %s300 = scalar_lea.vmem [#allocation2], %s299
        // Predicated region
        $region49: #{stylization_block.3} parent=47 // pred_check
          %p301 = pneg %p59
        $region50: #{stylization_block.3} parent=47 // pred_check_branch
          %303 = sbr.rel (%p301) target = $region52
        $region51: #{stylization_block.3} parent=47 // pred_region
          %304 = dma.done %s297, 8192
        $region52: #{stylization_block.3} parent=47 // pred_fallthru
          _
        %s305 = sand.u32 %s46, 1
        %s306 = scalar_lea.sflag [#allocation3], %s305
        %s307 = sand.u32 %s46, 1
        %s308 = smul.addr %s307, 512
        %s309 = scalar_lea.vmem [#allocation2], %s308
        %p310 = pneg %p59
        %p311 = pneg %p56
        %p312 = scmp.lt.s32.totalorder %s28, 1
        %s313 = scalar_select %p312, %s28, 1
        %s314 = scalar_lea.vmem %s1, %s313
        %p315 = pneg %p85
        %p316 = pneg %p82
        %p317 = scmp.lt.s32.totalorder %s28, 1
        %s318 = scalar_select %p317, %s28, 1
        %s319 = scalar_lea.vmem %s2, %s318
        %p320 = pneg %p111
        %p321 = pneg %p108
        %p322 = pneg %p132
        %p323 = pneg %p129
        %p324 = pneg %p153
        %p325 = pneg %p150
        %p326 = pneg %p174
        %p327 = pneg %p171
        %p328 = pneg %p195
        %p329 = pneg %p192
        %p330 = pneg %p223
        %p331 = pneg %p220
        %s332 = sand.u32 %s210, 1
        %s333 = scalar_lea.sflag [#allocation4], %s332
        %s334 = sand.u32 %s210, 1
        %s335 = smul.addr %s334, 512
        %s336 = scalar_lea.vmem [#allocation5], %s335
        %s337 = smul.u32 64, %s29
        %p338 = scmp.lt.s32.totalorder %s28, 1
        %s339 = scalar_select %p338, %s28, 1
        %s340 = scalar_lea.vmem %s1, %s339
        %p341 = scmp.lt.s32.totalorder %s28, 1
        %s342 = scalar_select %p341, %s28, 1
        %s343 = scalar_lea.vmem %s2, %s342
        %s344 = smul.u32 64, %s29
        %v346 = vld [vmem:[%s300] sm:$0xff]
        %v347 = vld [vmem:[%s300 + $0x8] sm:$0xff]
        %v348 = vld [vmem:[%s300 + $0x10] sm:$0xff]
        %v349 = vld [vmem:[%s300 + $0x18] sm:$0xff]
        %v350 = vld [vmem:[%s300 + $0x20] sm:$0xff]
        %v351 = vld [vmem:[%s300 + $0x28] sm:$0xff]
        %v352 = vld [vmem:[%s300 + $0x30] sm:$0xff]
        %v353 = vld [vmem:[%s300 + $0x38] sm:$0xff]
        %v354 = vld [vmem:[%s300 + $0x40] sm:$0xff]
        %v355 = vld [vmem:[%s300 + $0x48] sm:$0xff]
        %v356 = vld [vmem:[%s300 + $0x50] sm:$0xff]
        %v357 = vld [vmem:[%s300 + $0x58] sm:$0xff]
        %v358 = vld [vmem:[%s300 + $0x60] sm:$0xff]
        %v359 = vld [vmem:[%s300 + $0x68] sm:$0xff]
        %v360 = vld [vmem:[%s300 + $0x70] sm:$0xff]
        %v361 = vld [vmem:[%s300 + $0x78] sm:$0xff]
        %v362 = vld [vmem:[%s300 + $0x80] sm:$0xff]
        %v363 = vld [vmem:[%s300 + $0x88] sm:$0xff]
        %v364 = vld [vmem:[%s300 + $0x90] sm:$0xff]
        %v365 = vld [vmem:[%s300 + $0x98] sm:$0xff]
        %v366 = vld [vmem:[%s300 + $0xa0] sm:$0xff]
        %v367 = vld [vmem:[%s300 + $0xa8] sm:$0xff]
        %v368 = vld [vmem:[%s300 + $0xb0] sm:$0xff]
        %v369 = vld [vmem:[%s300 + $0xb8] sm:$0xff]
        %v370 = vld [vmem:[%s300 + $0xc0] sm:$0xff]
        %v371 = vld [vmem:[%s300 + $0xc8] sm:$0xff]
        %v372 = vld [vmem:[%s300 + $0xd0] sm:$0xff]
        %v373 = vld [vmem:[%s300 + $0xd8] sm:$0xff]
        %v374 = vld [vmem:[%s300 + $0xe0] sm:$0xff]
        %v375 = vld [vmem:[%s300 + $0xe8] sm:$0xff]
        %v376 = vld [vmem:[%s300 + $0xf0] sm:$0xff]
        %v377 = vld [vmem:[%s300 + $0xf8] sm:$0xff]
        %v378 = vld [vmem:[%s300 + $0x100] sm:$0xff]
        %v379 = vld [vmem:[%s300 + $0x108] sm:$0xff]
        %v380 = vld [vmem:[%s300 + $0x110] sm:$0xff]
        %v381 = vld [vmem:[%s300 + $0x118] sm:$0xff]
        %v382 = vld [vmem:[%s300 + $0x120] sm:$0xff]
        %v383 = vld [vmem:[%s300 + $0x128] sm:$0xff]
        %v384 = vld [vmem:[%s300 + $0x130] sm:$0xff]
        %v385 = vld [vmem:[%s300 + $0x138] sm:$0xff]
        %v386 = vld [vmem:[%s300 + $0x140] sm:$0xff]
        %v387 = vld [vmem:[%s300 + $0x148] sm:$0xff]
        %v388 = vld [vmem:[%s300 + $0x150] sm:$0xff]
        %v389 = vld [vmem:[%s300 + $0x158] sm:$0xff]
        %v390 = vld [vmem:[%s300 + $0x160] sm:$0xff]
        %v391 = vld [vmem:[%s300 + $0x168] sm:$0xff]
        %v392 = vld [vmem:[%s300 + $0x170] sm:$0xff]
        %v393 = vld [vmem:[%s300 + $0x178] sm:$0xff]
        %v394 = vld [vmem:[%s300 + $0x180] sm:$0xff]
        %v395 = vld [vmem:[%s300 + $0x188] sm:$0xff]
        %v396 = vld [vmem:[%s300 + $0x190] sm:$0xff]
        %v397 = vld [vmem:[%s300 + $0x198] sm:$0xff]
        %v398 = vld [vmem:[%s300 + $0x1a0] sm:$0xff]
        %v399 = vld [vmem:[%s300 + $0x1a8] sm:$0xff]
        %v400 = vld [vmem:[%s300 + $0x1b0] sm:$0xff]
        %v401 = vld [vmem:[%s300 + $0x1b8] sm:$0xff]
        %v402 = vld [vmem:[%s300 + $0x1c0] sm:$0xff]
        %v403 = vld [vmem:[%s300 + $0x1c8] sm:$0xff]
        %v404 = vld [vmem:[%s300 + $0x1d0] sm:$0xff]
        %v405 = vld [vmem:[%s300 + $0x1d8] sm:$0xff]
        %v406 = vld [vmem:[%s300 + $0x1e0] sm:$0xff]
        %v407 = vld [vmem:[%s300 + $0x1e8] sm:$0xff]
        %v408 = vld [vmem:[%s300 + $0x1f0] sm:$0xff]
        %v409 = vld [vmem:[%s300 + $0x1f8] sm:$0xff]
        %410 = vadd.xlane.f32.xlu0 %v346
        %v411 = vpop.xlane.xlu0 %410
        %412 = vadd.xlane.f32.xlu0 %v347
        %v413 = vpop.xlane.xlu0 %412
        %414 = vadd.xlane.f32.xlu0 %v348
        %v415 = vpop.xlane.xlu0 %414
        %416 = vadd.xlane.f32.xlu0 %v349
        %v417 = vpop.xlane.xlu0 %416
        %418 = vadd.xlane.f32.xlu0 %v350
        %v419 = vpop.xlane.xlu0 %418
        %420 = vadd.xlane.f32.xlu0 %v351
        %v421 = vpop.xlane.xlu0 %420
        %422 = vadd.xlane.f32.xlu0 %v352
        %v423 = vpop.xlane.xlu0 %422
        %424 = vadd.xlane.f32.xlu0 %v353
        %v425 = vpop.xlane.xlu0 %424
        %426 = vadd.xlane.f32.xlu0 %v354
        %v427 = vpop.xlane.xlu0 %426
        %428 = vadd.xlane.f32.xlu0 %v355
        %v429 = vpop.xlane.xlu0 %428
        %430 = vadd.xlane.f32.xlu0 %v356
        %v431 = vpop.xlane.xlu0 %430
        %432 = vadd.xlane.f32.xlu0 %v357
        %v433 = vpop.xlane.xlu0 %432
        %434 = vadd.xlane.f32.xlu0 %v358
        %v435 = vpop.xlane.xlu0 %434
        %436 = vadd.xlane.f32.xlu0 %v359
        %v437 = vpop.xlane.xlu0 %436
        %438 = vadd.xlane.f32.xlu0 %v360
        %v439 = vpop.xlane.xlu0 %438
        %440 = vadd.xlane.f32.xlu0 %v361
        %v441 = vpop.xlane.xlu0 %440
        %442 = vadd.xlane.f32.xlu0 %v362
        %v443 = vpop.xlane.xlu0 %442
        %444 = vadd.xlane.f32.xlu0 %v363
        %v445 = vpop.xlane.xlu0 %444
        %446 = vadd.xlane.f32.xlu0 %v364
        %v447 = vpop.xlane.xlu0 %446
        %448 = vadd.xlane.f32.xlu0 %v365
        %v449 = vpop.xlane.xlu0 %448
        %450 = vadd.xlane.f32.xlu0 %v366
        %v451 = vpop.xlane.xlu0 %450
        %452 = vadd.xlane.f32.xlu0 %v367
        %v453 = vpop.xlane.xlu0 %452
        %454 = vadd.xlane.f32.xlu0 %v368
        %v455 = vpop.xlane.xlu0 %454
        %456 = vadd.xlane.f32.xlu0 %v369
        %v457 = vpop.xlane.xlu0 %456
        %458 = vadd.xlane.f32.xlu0 %v370
        %v459 = vpop.xlane.xlu0 %458
        %460 = vadd.xlane.f32.xlu0 %v371
        %v461 = vpop.xlane.xlu0 %460
        %462 = vadd.xlane.f32.xlu0 %v372
        %v463 = vpop.xlane.xlu0 %462
        %464 = vadd.xlane.f32.xlu0 %v373
        %v465 = vpop.xlane.xlu0 %464
        %466 = vadd.xlane.f32.xlu0 %v374
        %v467 = vpop.xlane.xlu0 %466
        %468 = vadd.xlane.f32.xlu0 %v375
        %v469 = vpop.xlane.xlu0 %468
        %470 = vadd.xlane.f32.xlu0 %v376
        %v471 = vpop.xlane.xlu0 %470
        %472 = vadd.xlane.f32.xlu0 %v377
        %v473 = vpop.xlane.xlu0 %472
        %474 = vadd.xlane.f32.xlu0 %v378
        %v475 = vpop.xlane.xlu0 %474
        %476 = vadd.xlane.f32.xlu0 %v379
        %v477 = vpop.xlane.xlu0 %476
        %478 = vadd.xlane.f32.xlu0 %v380
        %v479 = vpop.xlane.xlu0 %478
        %480 = vadd.xlane.f32.xlu0 %v381
        %v481 = vpop.xlane.xlu0 %480
        %482 = vadd.xlane.f32.xlu0 %v382
        %v483 = vpop.xlane.xlu0 %482
        %484 = vadd.xlane.f32.xlu0 %v383
        %v485 = vpop.xlane.xlu0 %484
        %486 = vadd.xlane.f32.xlu0 %v384
        %v487 = vpop.xlane.xlu0 %486
        %488 = vadd.xlane.f32.xlu0 %v385
        %v489 = vpop.xlane.xlu0 %488
        %490 = vadd.xlane.f32.xlu0 %v386
        %v491 = vpop.xlane.xlu0 %490
        %492 = vadd.xlane.f32.xlu0 %v387
        %v493 = vpop.xlane.xlu0 %492
        %494 = vadd.xlane.f32.xlu0 %v388
        %v495 = vpop.xlane.xlu0 %494
        %496 = vadd.xlane.f32.xlu0 %v389
        %v497 = vpop.xlane.xlu0 %496
        %498 = vadd.xlane.f32.xlu0 %v390
        %v499 = vpop.xlane.xlu0 %498
        %500 = vadd.xlane.f32.xlu0 %v391
        %v501 = vpop.xlane.xlu0 %500
        %502 = vadd.xlane.f32.xlu0 %v392
        %v503 = vpop.xlane.xlu0 %502
        %504 = vadd.xlane.f32.xlu0 %v393
        %v505 = vpop.xlane.xlu0 %504
        %506 = vadd.xlane.f32.xlu0 %v394
        %v507 = vpop.xlane.xlu0 %506
        %508 = vadd.xlane.f32.xlu0 %v395
        %v509 = vpop.xlane.xlu0 %508
        %510 = vadd.xlane.f32.xlu0 %v396
        %v511 = vpop.xlane.xlu0 %510
        %512 = vadd.xlane.f32.xlu0 %v397
        %v513 = vpop.xlane.xlu0 %512
        %514 = vadd.xlane.f32.xlu0 %v398
        %v515 = vpop.xlane.xlu0 %514
        %516 = vadd.xlane.f32.xlu0 %v399
        %v517 = vpop.xlane.xlu0 %516
        %518 = vadd.xlane.f32.xlu0 %v400
        %v519 = vpop.xlane.xlu0 %518
        %520 = vadd.xlane.f32.xlu0 %v401
        %v521 = vpop.xlane.xlu0 %520
        %522 = vadd.xlane.f32.xlu0 %v402
        %v523 = vpop.xlane.xlu0 %522
        %524 = vadd.xlane.f32.xlu0 %v403
        %v525 = vpop.xlane.xlu0 %524
        %526 = vadd.xlane.f32.xlu0 %v404
        %v527 = vpop.xlane.xlu0 %526
        %528 = vadd.xlane.f32.xlu0 %v405
        %v529 = vpop.xlane.xlu0 %528
        %530 = vadd.xlane.f32.xlu0 %v406
        %v531 = vpop.xlane.xlu0 %530
        %532 = vadd.xlane.f32.xlu0 %v407
        %v533 = vpop.xlane.xlu0 %532
        %534 = vadd.xlane.f32.xlu0 %v408
        %v535 = vpop.xlane.xlu0 %534
        %536 = vadd.xlane.f32.xlu0 %v409
        %v537 = vpop.xlane.xlu0 %536
        %v538 = vrcp.pop 128.0
        %v539 = vmul.f32 %v411, %v538
        %v540 = vmul.f32 %v413, %v538
        %v541 = vmul.f32 %v415, %v538
        %v542 = vmul.f32 %v417, %v538
        %v543 = vmul.f32 %v419, %v538
        %v544 = vmul.f32 %v421, %v538
        %v545 = vmul.f32 %v423, %v538
        %v546 = vmul.f32 %v425, %v538
        %v547 = vmul.f32 %v427, %v538
        %v548 = vmul.f32 %v429, %v538
        %v549 = vmul.f32 %v431, %v538
        %v550 = vmul.f32 %v433, %v538
        %v551 = vmul.f32 %v435, %v538
        %v552 = vmul.f32 %v437, %v538
        %v553 = vmul.f32 %v439, %v538
        %v554 = vmul.f32 %v441, %v538
        %v555 = vmul.f32 %v443, %v538
        %v556 = vmul.f32 %v445, %v538
        %v557 = vmul.f32 %v447, %v538
        %v558 = vmul.f32 %v449, %v538
        %v559 = vmul.f32 %v451, %v538
        %v560 = vmul.f32 %v453, %v538
        %v561 = vmul.f32 %v455, %v538
        %v562 = vmul.f32 %v457, %v538
        %v563 = vmul.f32 %v459, %v538
        %v564 = vmul.f32 %v461, %v538
        %v565 = vmul.f32 %v463, %v538
        %v566 = vmul.f32 %v465, %v538
        %v567 = vmul.f32 %v467, %v538
        %v568 = vmul.f32 %v469, %v538
        %v569 = vmul.f32 %v471, %v538
        %v570 = vmul.f32 %v473, %v538
        %v571 = vmul.f32 %v475, %v538
        %v572 = vmul.f32 %v477, %v538
        %v573 = vmul.f32 %v479, %v538
        %v574 = vmul.f32 %v481, %v538
        %v575 = vmul.f32 %v483, %v538
        %v576 = vmul.f32 %v485, %v538
        %v577 = vmul.f32 %v487, %v538
        %v578 = vmul.f32 %v489, %v538
        %v579 = vmul.f32 %v491, %v538
        %v580 = vmul.f32 %v493, %v538
        %v581 = vmul.f32 %v495, %v538
        %v582 = vmul.f32 %v497, %v538
        %v583 = vmul.f32 %v499, %v538
        %v584 = vmul.f32 %v501, %v538
        %v585 = vmul.f32 %v503, %v538
        %v586 = vmul.f32 %v505, %v538
        %v587 = vmul.f32 %v507, %v538
        %v588 = vmul.f32 %v509, %v538
        %v589 = vmul.f32 %v511, %v538
        %v590 = vmul.f32 %v513, %v538
        %v591 = vmul.f32 %v515, %v538
        %v592 = vmul.f32 %v517, %v538
        %v593 = vmul.f32 %v519, %v538
        %v594 = vmul.f32 %v521, %v538
        %v595 = vmul.f32 %v523, %v538
        %v596 = vmul.f32 %v525, %v538
        %v597 = vmul.f32 %v527, %v538
        %v598 = vmul.f32 %v529, %v538
        %v599 = vmul.f32 %v531, %v538
        %v600 = vmul.f32 %v533, %v538
        %v601 = vmul.f32 %v535, %v538
        %v602 = vmul.f32 %v537, %v538
        %v603 = vsub.f32 %v346, %v539
        %v604 = vsub.f32 %v347, %v540
        %v605 = vsub.f32 %v348, %v541
        %v606 = vsub.f32 %v349, %v542
        %v607 = vsub.f32 %v350, %v543
        %v608 = vsub.f32 %v351, %v544
        %v609 = vsub.f32 %v352, %v545
        %v610 = vsub.f32 %v353, %v546
        %v611 = vsub.f32 %v354, %v547
        %v612 = vsub.f32 %v355, %v548
        %v613 = vsub.f32 %v356, %v549
        %v614 = vsub.f32 %v357, %v550
        %v615 = vsub.f32 %v358, %v551
        %v616 = vsub.f32 %v359, %v552
        %v617 = vsub.f32 %v360, %v553
        %v618 = vsub.f32 %v361, %v554
        %v619 = vsub.f32 %v362, %v555
        %v620 = vsub.f32 %v363, %v556
        %v621 = vsub.f32 %v364, %v557
        %v622 = vsub.f32 %v365, %v558
        %v623 = vsub.f32 %v366, %v559
        %v624 = vsub.f32 %v367, %v560
        %v625 = vsub.f32 %v368, %v561
        %v626 = vsub.f32 %v369, %v562
        %v627 = vsub.f32 %v370, %v563
        %v628 = vsub.f32 %v371, %v564
        %v629 = vsub.f32 %v372, %v565
        %v630 = vsub.f32 %v373, %v566
        %v631 = vsub.f32 %v374, %v567
        %v632 = vsub.f32 %v375, %v568
        %v633 = vsub.f32 %v376, %v569
        %v634 = vsub.f32 %v377, %v570
        %v635 = vsub.f32 %v378, %v571
        %v636 = vsub.f32 %v379, %v572
        %v637 = vsub.f32 %v380, %v573
        %v638 = vsub.f32 %v381, %v574
        %v639 = vsub.f32 %v382, %v575
        %v640 = vsub.f32 %v383, %v576
        %v641 = vsub.f32 %v384, %v577
        %v642 = vsub.f32 %v385, %v578
        %v643 = vsub.f32 %v386, %v579
        %v644 = vsub.f32 %v387, %v580
        %v645 = vsub.f32 %v388, %v581
        %v646 = vsub.f32 %v389, %v582
        %v647 = vsub.f32 %v390, %v583
        %v648 = vsub.f32 %v391, %v584
        %v649 = vsub.f32 %v392, %v585
        %v650 = vsub.f32 %v393, %v586
        %v651 = vsub.f32 %v394, %v587
        %v652 = vsub.f32 %v395, %v588
        %v653 = vsub.f32 %v396, %v589
        %v654 = vsub.f32 %v397, %v590
        %v655 = vsub.f32 %v398, %v591
        %v656 = vsub.f32 %v399, %v592
        %v657 = vsub.f32 %v400, %v593
        %v658 = vsub.f32 %v401, %v594
        %v659 = vsub.f32 %v402, %v595
        %v660 = vsub.f32 %v403, %v596
        %v661 = vsub.f32 %v404, %v597
        %v662 = vsub.f32 %v405, %v598
        %v663 = vsub.f32 %v406, %v599
        %v664 = vsub.f32 %v407, %v600
        %v665 = vsub.f32 %v408, %v601
        %v666 = vsub.f32 %v409, %v602
        %v667 = vmul.f32 %v603, %v603
        %v668 = vmul.f32 %v604, %v604
        %v669 = vmul.f32 %v605, %v605
        %v670 = vmul.f32 %v606, %v606
        %v671 = vmul.f32 %v607, %v607
        %v672 = vmul.f32 %v608, %v608
        %v673 = vmul.f32 %v609, %v609
        %v674 = vmul.f32 %v610, %v610
        %v675 = vmul.f32 %v611, %v611
        %v676 = vmul.f32 %v612, %v612
        %v677 = vmul.f32 %v613, %v613
        %v678 = vmul.f32 %v614, %v614
        %v679 = vmul.f32 %v615, %v615
        %v680 = vmul.f32 %v616, %v616
        %v681 = vmul.f32 %v617, %v617
        %v682 = vmul.f32 %v618, %v618
        %v683 = vmul.f32 %v619, %v619
        %v684 = vmul.f32 %v620, %v620
        %v685 = vmul.f32 %v621, %v621
        %v686 = vmul.f32 %v622, %v622
        %v687 = vmul.f32 %v623, %v623
        %v688 = vmul.f32 %v624, %v624
        %v689 = vmul.f32 %v625, %v625
        %v690 = vmul.f32 %v626, %v626
        %v691 = vmul.f32 %v627, %v627
        %v692 = vmul.f32 %v628, %v628
        %v693 = vmul.f32 %v629, %v629
        %v694 = vmul.f32 %v630, %v630
        %v695 = vmul.f32 %v631, %v631
        %v696 = vmul.f32 %v632, %v632
        %v697 = vmul.f32 %v633, %v633
        %v698 = vmul.f32 %v634, %v634
        %v699 = vmul.f32 %v635, %v635
        %v700 = vmul.f32 %v636, %v636
        %v701 = vmul.f32 %v637, %v637
        %v702 = vmul.f32 %v638, %v638
        %v703 = vmul.f32 %v639, %v639
        %v704 = vmul.f32 %v640, %v640
        %v705 = vmul.f32 %v641, %v641
        %v706 = vmul.f32 %v642, %v642
        %v707 = vmul.f32 %v643, %v643
        %v708 = vmul.f32 %v644, %v644
        %v709 = vmul.f32 %v645, %v645
        %v710 = vmul.f32 %v646, %v646
        %v711 = vmul.f32 %v647, %v647
        %v712 = vmul.f32 %v648, %v648
        %v713 = vmul.f32 %v649, %v649
        %v714 = vmul.f32 %v650, %v650
        %v715 = vmul.f32 %v651, %v651
        %v716 = vmul.f32 %v652, %v652
        %v717 = vmul.f32 %v653, %v653
        %v718 = vmul.f32 %v654, %v654
        %v719 = vmul.f32 %v655, %v655
        %v720 = vmul.f32 %v656, %v656
        %v721 = vmul.f32 %v657, %v657
        %v722 = vmul.f32 %v658, %v658
        %v723 = vmul.f32 %v659, %v659
        %v724 = vmul.f32 %v660, %v660
        %v725 = vmul.f32 %v661, %v661
        %v726 = vmul.f32 %v662, %v662
        %v727 = vmul.f32 %v663, %v663
        %v728 = vmul.f32 %v664, %v664
        %v729 = vmul.f32 %v665, %v665
        %v730 = vmul.f32 %v666, %v666
        %731 = vadd.xlane.f32.xlu0 %v667
        %v732 = vpop.xlane.xlu0 %731
        %733 = vadd.xlane.f32.xlu0 %v668
        %v734 = vpop.xlane.xlu0 %733
        %735 = vadd.xlane.f32.xlu0 %v669
        %v736 = vpop.xlane.xlu0 %735
        %737 = vadd.xlane.f32.xlu0 %v670
        %v738 = vpop.xlane.xlu0 %737
        %739 = vadd.xlane.f32.xlu0 %v671
        %v740 = vpop.xlane.xlu0 %739
        %741 = vadd.xlane.f32.xlu0 %v672
        %v742 = vpop.xlane.xlu0 %741
        %743 = vadd.xlane.f32.xlu0 %v673
        %v744 = vpop.xlane.xlu0 %743
        %745 = vadd.xlane.f32.xlu0 %v674
        %v746 = vpop.xlane.xlu0 %745
        %747 = vadd.xlane.f32.xlu0 %v675
        %v748 = vpop.xlane.xlu0 %747
        %749 = vadd.xlane.f32.xlu0 %v676
        %v750 = vpop.xlane.xlu0 %749
        %751 = vadd.xlane.f32.xlu0 %v677
        %v752 = vpop.xlane.xlu0 %751
        %753 = vadd.xlane.f32.xlu0 %v678
        %v754 = vpop.xlane.xlu0 %753
        %755 = vadd.xlane.f32.xlu0 %v679
        %v756 = vpop.xlane.xlu0 %755
        %757 = vadd.xlane.f32.xlu0 %v680
        %v758 = vpop.xlane.xlu0 %757
        %759 = vadd.xlane.f32.xlu0 %v681
        %v760 = vpop.xlane.xlu0 %759
        %761 = vadd.xlane.f32.xlu0 %v682
        %v762 = vpop.xlane.xlu0 %761
        %763 = vadd.xlane.f32.xlu0 %v683
        %v764 = vpop.xlane.xlu0 %763
        %765 = vadd.xlane.f32.xlu0 %v684
        %v766 = vpop.xlane.xlu0 %765
        %767 = vadd.xlane.f32.xlu0 %v685
        %v768 = vpop.xlane.xlu0 %767
        %769 = vadd.xlane.f32.xlu0 %v686
        %v770 = vpop.xlane.xlu0 %769
        %771 = vadd.xlane.f32.xlu0 %v687
        %v772 = vpop.xlane.xlu0 %771
        %773 = vadd.xlane.f32.xlu0 %v688
        %v774 = vpop.xlane.xlu0 %773
        %775 = vadd.xlane.f32.xlu0 %v689
        %v776 = vpop.xlane.xlu0 %775
        %777 = vadd.xlane.f32.xlu0 %v690
        %v778 = vpop.xlane.xlu0 %777
        %779 = vadd.xlane.f32.xlu0 %v691
        %v780 = vpop.xlane.xlu0 %779
        %781 = vadd.xlane.f32.xlu0 %v692
        %v782 = vpop.xlane.xlu0 %781
        %783 = vadd.xlane.f32.xlu0 %v693
        %v784 = vpop.xlane.xlu0 %783
        %785 = vadd.xlane.f32.xlu0 %v694
        %v786 = vpop.xlane.xlu0 %785
        %787 = vadd.xlane.f32.xlu0 %v695
        %v788 = vpop.xlane.xlu0 %787
        %789 = vadd.xlane.f32.xlu0 %v696
        %v790 = vpop.xlane.xlu0 %789
        %791 = vadd.xlane.f32.xlu0 %v697
        %v792 = vpop.xlane.xlu0 %791
        %793 = vadd.xlane.f32.xlu0 %v698
        %v794 = vpop.xlane.xlu0 %793
        %795 = vadd.xlane.f32.xlu0 %v699
        %v796 = vpop.xlane.xlu0 %795
        %797 = vadd.xlane.f32.xlu0 %v700
        %v798 = vpop.xlane.xlu0 %797
        %799 = vadd.xlane.f32.xlu0 %v701
        %v800 = vpop.xlane.xlu0 %799
        %801 = vadd.xlane.f32.xlu0 %v702
        %v802 = vpop.xlane.xlu0 %801
        %803 = vadd.xlane.f32.xlu0 %v703
        %v804 = vpop.xlane.xlu0 %803
        %805 = vadd.xlane.f32.xlu0 %v704
        %v806 = vpop.xlane.xlu0 %805
        %807 = vadd.xlane.f32.xlu0 %v705
        %v808 = vpop.xlane.xlu0 %807
        %809 = vadd.xlane.f32.xlu0 %v706
        %v810 = vpop.xlane.xlu0 %809
        %811 = vadd.xlane.f32.xlu0 %v707
        %v812 = vpop.xlane.xlu0 %811
        %813 = vadd.xlane.f32.xlu0 %v708
        %v814 = vpop.xlane.xlu0 %813
        %815 = vadd.xlane.f32.xlu0 %v709
        %v816 = vpop.xlane.xlu0 %815
        %817 = vadd.xlane.f32.xlu0 %v710
        %v818 = vpop.xlane.xlu0 %817
        %819 = vadd.xlane.f32.xlu0 %v711
        %v820 = vpop.xlane.xlu0 %819
        %821 = vadd.xlane.f32.xlu0 %v712
        %v822 = vpop.xlane.xlu0 %821
        %823 = vadd.xlane.f32.xlu0 %v713
        %v824 = vpop.xlane.xlu0 %823
        %825 = vadd.xlane.f32.xlu0 %v714
        %v826 = vpop.xlane.xlu0 %825
        %827 = vadd.xlane.f32.xlu0 %v715
        %v828 = vpop.xlane.xlu0 %827
        %829 = vadd.xlane.f32.xlu0 %v716
        %v830 = vpop.xlane.xlu0 %829
        %831 = vadd.xlane.f32.xlu0 %v717
        %v832 = vpop.xlane.xlu0 %831
        %833 = vadd.xlane.f32.xlu0 %v718
        %v834 = vpop.xlane.xlu0 %833
        %835 = vadd.xlane.f32.xlu0 %v719
        %v836 = vpop.xlane.xlu0 %835
        %837 = vadd.xlane.f32.xlu0 %v720
        %v838 = vpop.xlane.xlu0 %837
        %839 = vadd.xlane.f32.xlu0 %v721
        %v840 = vpop.xlane.xlu0 %839
        %841 = vadd.xlane.f32.xlu0 %v722
        %v842 = vpop.xlane.xlu0 %841
        %843 = vadd.xlane.f32.xlu0 %v723
        %v844 = vpop.xlane.xlu0 %843
        %845 = vadd.xlane.f32.xlu0 %v724
        %v846 = vpop.xlane.xlu0 %845
        %847 = vadd.xlane.f32.xlu0 %v725
        %v848 = vpop.xlane.xlu0 %847
        %849 = vadd.xlane.f32.xlu0 %v726
        %v850 = vpop.xlane.xlu0 %849
        %851 = vadd.xlane.f32.xlu0 %v727
        %v852 = vpop.xlane.xlu0 %851
        %853 = vadd.xlane.f32.xlu0 %v728
        %v854 = vpop.xlane.xlu0 %853
        %855 = vadd.xlane.f32.xlu0 %v729
        %v856 = vpop.xlane.xlu0 %855
        %857 = vadd.xlane.f32.xlu0 %v730
        %v858 = vpop.xlane.xlu0 %857
        %v859 = vmul.f32 %v732, %v538
        %v860 = vmul.f32 %v734, %v538
        %v861 = vmul.f32 %v736, %v538
        %v862 = vmul.f32 %v738, %v538
        %v863 = vmul.f32 %v740, %v538
        %v864 = vmul.f32 %v742, %v538
        %v865 = vmul.f32 %v744, %v538
        %v866 = vmul.f32 %v746, %v538
        %v867 = vmul.f32 %v748, %v538
        %v868 = vmul.f32 %v750, %v538
        %v869 = vmul.f32 %v752, %v538
        %v870 = vmul.f32 %v754, %v538
        %v871 = vmul.f32 %v756, %v538
        %v872 = vmul.f32 %v758, %v538
        %v873 = vmul.f32 %v760, %v538
        %v874 = vmul.f32 %v762, %v538
        %v875 = vmul.f32 %v764, %v538
        %v876 = vmul.f32 %v766, %v538
        %v877 = vmul.f32 %v768, %v538
        %v878 = vmul.f32 %v770, %v538
        %v879 = vmul.f32 %v772, %v538
        %v880 = vmul.f32 %v774, %v538
        %v881 = vmul.f32 %v776, %v538
        %v882 = vmul.f32 %v778, %v538
        %v883 = vmul.f32 %v780, %v538
        %v884 = vmul.f32 %v782, %v538
        %v885 = vmul.f32 %v784, %v538
        %v886 = vmul.f32 %v786, %v538
        %v887 = vmul.f32 %v788, %v538
        %v888 = vmul.f32 %v790, %v538
        %v889 = vmul.f32 %v792, %v538
        %v890 = vmul.f32 %v794, %v538
        %v891 = vmul.f32 %v796, %v538
        %v892 = vmul.f32 %v798, %v538
        %v893 = vmul.f32 %v800, %v538
        %v894 = vmul.f32 %v802, %v538
        %v895 = vmul.f32 %v804, %v538
        %v896 = vmul.f32 %v806, %v538
        %v897 = vmul.f32 %v808, %v538
        %v898 = vmul.f32 %v810, %v538
        %v899 = vmul.f32 %v812, %v538
        %v900 = vmul.f32 %v814, %v538
        %v901 = vmul.f32 %v816, %v538
        %v902 = vmul.f32 %v818, %v538
        %v903 = vmul.f32 %v820, %v538
        %v904 = vmul.f32 %v822, %v538
        %v905 = vmul.f32 %v824, %v538
        %v906 = vmul.f32 %v826, %v538
        %v907 = vmul.f32 %v828, %v538
        %v908 = vmul.f32 %v830, %v538
        %v909 = vmul.f32 %v832, %v538
        %v910 = vmul.f32 %v834, %v538
        %v911 = vmul.f32 %v836, %v538
        %v912 = vmul.f32 %v838, %v538
        %v913 = vmul.f32 %v840, %v538
        %v914 = vmul.f32 %v842, %v538
        %v915 = vmul.f32 %v844, %v538
        %v916 = vmul.f32 %v846, %v538
        %v917 = vmul.f32 %v848, %v538
        %v918 = vmul.f32 %v850, %v538
        %v919 = vmul.f32 %v852, %v538
        %v920 = vmul.f32 %v854, %v538
        %v921 = vmul.f32 %v856, %v538
        %v922 = vmul.f32 %v858, %v538
        %v923 = vadd.f32 %v859, 1e-05
        %v924 = vadd.f32 %v860, 1e-05
        %v925 = vadd.f32 %v861, 1e-05
        %v926 = vadd.f32 %v862, 1e-05
        %v927 = vadd.f32 %v863, 1e-05
        %v928 = vadd.f32 %v864, 1e-05
        %v929 = vadd.f32 %v865, 1e-05
        %v930 = vadd.f32 %v866, 1e-05
        %v931 = vadd.f32 %v867, 1e-05
        %v932 = vadd.f32 %v868, 1e-05
        %v933 = vadd.f32 %v869, 1e-05
        %v934 = vadd.f32 %v870, 1e-05
        %v935 = vadd.f32 %v871, 1e-05
        %v936 = vadd.f32 %v872, 1e-05
        %v937 = vadd.f32 %v873, 1e-05
        %v938 = vadd.f32 %v874, 1e-05
        %v939 = vadd.f32 %v875, 1e-05
        %v940 = vadd.f32 %v876, 1e-05
        %v941 = vadd.f32 %v877, 1e-05
        %v942 = vadd.f32 %v878, 1e-05
        %v943 = vadd.f32 %v879, 1e-05
        %v944 = vadd.f32 %v880, 1e-05
        %v945 = vadd.f32 %v881, 1e-05
        %v946 = vadd.f32 %v882, 1e-05
        %v947 = vadd.f32 %v883, 1e-05
        %v948 = vadd.f32 %v884, 1e-05
        %v949 = vadd.f32 %v885, 1e-05
        %v950 = vadd.f32 %v886, 1e-05
        %v951 = vadd.f32 %v887, 1e-05
        %v952 = vadd.f32 %v888, 1e-05
        %v953 = vadd.f32 %v889, 1e-05
        %v954 = vadd.f32 %v890, 1e-05
        %v955 = vadd.f32 %v891, 1e-05
        %v956 = vadd.f32 %v892, 1e-05
        %v957 = vadd.f32 %v893, 1e-05
        %v958 = vadd.f32 %v894, 1e-05
        %v959 = vadd.f32 %v895, 1e-05
        %v960 = vadd.f32 %v896, 1e-05
        %v961 = vadd.f32 %v897, 1e-05
        %v962 = vadd.f32 %v898, 1e-05
        %v963 = vadd.f32 %v899, 1e-05
        %v964 = vadd.f32 %v900, 1e-05
        %v965 = vadd.f32 %v901, 1e-05
        %v966 = vadd.f32 %v902, 1e-05
        %v967 = vadd.f32 %v903, 1e-05
        %v968 = vadd.f32 %v904, 1e-05
        %v969 = vadd.f32 %v905, 1e-05
        %v970 = vadd.f32 %v906, 1e-05
        %v971 = vadd.f32 %v907, 1e-05
        %v972 = vadd.f32 %v908, 1e-05
        %v973 = vadd.f32 %v909, 1e-05
        %v974 = vadd.f32 %v910, 1e-05
        %v975 = vadd.f32 %v911, 1e-05
        %v976 = vadd.f32 %v912, 1e-05
        %v977 = vadd.f32 %v913, 1e-05
        %v978 = vadd.f32 %v914, 1e-05
        %v979 = vadd.f32 %v915, 1e-05
        %v980 = vadd.f32 %v916, 1e-05
        %v981 = vadd.f32 %v917, 1e-05
        %v982 = vadd.f32 %v918, 1e-05
        %v983 = vadd.f32 %v919, 1e-05
        %v984 = vadd.f32 %v920, 1e-05
        %v985 = vadd.f32 %v921, 1e-05
        %v986 = vadd.f32 %v922, 1e-05
        %v987 = vrsqrt.pop %v923
        %v988 = vrsqrt.pop %v924
        %v989 = vrsqrt.pop %v925
        %v990 = vrsqrt.pop %v926
        %v991 = vrsqrt.pop %v927
        %v992 = vrsqrt.pop %v928
        %v993 = vrsqrt.pop %v929
        %v994 = vrsqrt.pop %v930
        %v995 = vrsqrt.pop %v931
        %v996 = vrsqrt.pop %v932
        %v997 = vrsqrt.pop %v933
        %v998 = vrsqrt.pop %v934
        %v999 = vrsqrt.pop %v935
        %v1000 = vrsqrt.pop %v936
        %v1001 = vrsqrt.pop %v937
        %v1002 = vrsqrt.pop %v938
        %v1003 = vrsqrt.pop %v939
        %v1004 = vrsqrt.pop %v940
        %v1005 = vrsqrt.pop %v941
        %v1006 = vrsqrt.pop %v942
        %v1007 = vrsqrt.pop %v943
        %v1008 = vrsqrt.pop %v944
        %v1009 = vrsqrt.pop %v945
        %v1010 = vrsqrt.pop %v946
        %v1011 = vrsqrt.pop %v947
        %v1012 = vrsqrt.pop %v948
        %v1013 = vrsqrt.pop %v949
        %v1014 = vrsqrt.pop %v950
        %v1015 = vrsqrt.pop %v951
        %v1016 = vrsqrt.pop %v952
        %v1017 = vrsqrt.pop %v953
        %v1018 = vrsqrt.pop %v954
        %v1019 = vrsqrt.pop %v955
        %v1020 = vrsqrt.pop %v956
        %v1021 = vrsqrt.pop %v957
        %v1022 = vrsqrt.pop %v958
        %v1023 = vrsqrt.pop %v959
        %v1024 = vrsqrt.pop %v960
        %v1025 = vrsqrt.pop %v961
        %v1026 = vrsqrt.pop %v962
        %v1027 = vrsqrt.pop %v963
        %v1028 = vrsqrt.pop %v964
        %v1029 = vrsqrt.pop %v965
        %v1030 = vrsqrt.pop %v966
        %v1031 = vrsqrt.pop %v967
        %v1032 = vrsqrt.pop %v968
        %v1033 = vrsqrt.pop %v969
        %v1034 = vrsqrt.pop %v970
        %v1035 = vrsqrt.pop %v971
        %v1036 = vrsqrt.pop %v972
        %v1037 = vrsqrt.pop %v973
        %v1038 = vrsqrt.pop %v974
        %v1039 = vrsqrt.pop %v975
        %v1040 = vrsqrt.pop %v976
        %v1041 = vrsqrt.pop %v977
        %v1042 = vrsqrt.pop %v978
        %v1043 = vrsqrt.pop %v979
        %v1044 = vrsqrt.pop %v980
        %v1045 = vrsqrt.pop %v981
        %v1046 = vrsqrt.pop %v982
        %v1047 = vrsqrt.pop %v983
        %v1048 = vrsqrt.pop %v984
        %v1049 = vrsqrt.pop %v985
        %v1050 = vrsqrt.pop %v986
        %v1051 = vmul.f32 %v603, %v987
        %v1052 = vmul.f32 %v604, %v988
        %v1053 = vmul.f32 %v605, %v989
        %v1054 = vmul.f32 %v606, %v990
        %v1055 = vmul.f32 %v607, %v991
        %v1056 = vmul.f32 %v608, %v992
        %v1057 = vmul.f32 %v609, %v993
        %v1058 = vmul.f32 %v610, %v994
        %v1059 = vmul.f32 %v611, %v995
        %v1060 = vmul.f32 %v612, %v996
        %v1061 = vmul.f32 %v613, %v997
        %v1062 = vmul.f32 %v614, %v998
        %v1063 = vmul.f32 %v615, %v999
        %v1064 = vmul.f32 %v616, %v1000
        %v1065 = vmul.f32 %v617, %v1001
        %v1066 = vmul.f32 %v618, %v1002
        %v1067 = vmul.f32 %v619, %v1003
        %v1068 = vmul.f32 %v620, %v1004
        %v1069 = vmul.f32 %v621, %v1005
        %v1070 = vmul.f32 %v622, %v1006
        %v1071 = vmul.f32 %v623, %v1007
        %v1072 = vmul.f32 %v624, %v1008
        %v1073 = vmul.f32 %v625, %v1009
        %v1074 = vmul.f32 %v626, %v1010
        %v1075 = vmul.f32 %v627, %v1011
        %v1076 = vmul.f32 %v628, %v1012
        %v1077 = vmul.f32 %v629, %v1013
        %v1078 = vmul.f32 %v630, %v1014
        %v1079 = vmul.f32 %v631, %v1015
        %v1080 = vmul.f32 %v632, %v1016
        %v1081 = vmul.f32 %v633, %v1017
        %v1082 = vmul.f32 %v634, %v1018
        %v1083 = vmul.f32 %v635, %v1019
        %v1084 = vmul.f32 %v636, %v1020
        %v1085 = vmul.f32 %v637, %v1021
        %v1086 = vmul.f32 %v638, %v1022
        %v1087 = vmul.f32 %v639, %v1023
        %v1088 = vmul.f32 %v640, %v1024
        %v1089 = vmul.f32 %v641, %v1025
        %v1090 = vmul.f32 %v642, %v1026
        %v1091 = vmul.f32 %v643, %v1027
        %v1092 = vmul.f32 %v644, %v1028
        %v1093 = vmul.f32 %v645, %v1029
        %v1094 = vmul.f32 %v646, %v1030
        %v1095 = vmul.f32 %v647, %v1031
        %v1096 = vmul.f32 %v648, %v1032
        %v1097 = vmul.f32 %v649, %v1033
        %v1098 = vmul.f32 %v650, %v1034
        %v1099 = vmul.f32 %v651, %v1035
        %v1100 = vmul.f32 %v652, %v1036
        %v1101 = vmul.f32 %v653, %v1037
        %v1102 = vmul.f32 %v654, %v1038
        %v1103 = vmul.f32 %v655, %v1039
        %v1104 = vmul.f32 %v656, %v1040
        %v1105 = vmul.f32 %v657, %v1041
        %v1106 = vmul.f32 %v658, %v1042
        %v1107 = vmul.f32 %v659, %v1043
        %v1108 = vmul.f32 %v660, %v1044
        %v1109 = vmul.f32 %v661, %v1045
        %v1110 = vmul.f32 %v662, %v1046
        %v1111 = vmul.f32 %v663, %v1047
        %v1112 = vmul.f32 %v664, %v1048
        %v1113 = vmul.f32 %v665, %v1049
        %v1114 = vmul.f32 %v666, %v1050
        %v1115 = vld [vmem:[%s3] sm:$0x1]
        %v1117 = vlaneseq
        %v1118 = vshrl.u32 %v1117, 7
        %v1119 = vsub.s32 0, %v1118
        %v1120 = vrot.slane %v1115, %v1119
        %v1122 = vmul.f32 %v1051, %v1120
        %v1123 = vmul.f32 %v1052, %v1120
        %v1124 = vmul.f32 %v1053, %v1120
        %v1125 = vmul.f32 %v1054, %v1120
        %v1126 = vmul.f32 %v1055, %v1120
        %v1127 = vmul.f32 %v1056, %v1120
        %v1128 = vmul.f32 %v1057, %v1120
        %v1129 = vmul.f32 %v1058, %v1120
        %v1130 = vmul.f32 %v1059, %v1120
        %v1131 = vmul.f32 %v1060, %v1120
        %v1132 = vmul.f32 %v1061, %v1120
        %v1133 = vmul.f32 %v1062, %v1120
        %v1134 = vmul.f32 %v1063, %v1120
        %v1135 = vmul.f32 %v1064, %v1120
        %v1136 = vmul.f32 %v1065, %v1120
        %v1137 = vmul.f32 %v1066, %v1120
        %v1138 = vmul.f32 %v1067, %v1120
        %v1139 = vmul.f32 %v1068, %v1120
        %v1140 = vmul.f32 %v1069, %v1120
        %v1141 = vmul.f32 %v1070, %v1120
        %v1142 = vmul.f32 %v1071, %v1120
        %v1143 = vmul.f32 %v1072, %v1120
        %v1144 = vmul.f32 %v1073, %v1120
        %v1145 = vmul.f32 %v1074, %v1120
        %v1146 = vmul.f32 %v1075, %v1120
        %v1147 = vmul.f32 %v1076, %v1120
        %v1148 = vmul.f32 %v1077, %v1120
        %v1149 = vmul.f32 %v1078, %v1120
        %v1150 = vmul.f32 %v1079, %v1120
        %v1151 = vmul.f32 %v1080, %v1120
        %v1152 = vmul.f32 %v1081, %v1120
        %v1153 = vmul.f32 %v1082, %v1120
        %v1154 = vmul.f32 %v1083, %v1120
        %v1155 = vmul.f32 %v1084, %v1120
        %v1156 = vmul.f32 %v1085, %v1120
        %v1157 = vmul.f32 %v1086, %v1120
        %v1158 = vmul.f32 %v1087, %v1120
        %v1159 = vmul.f32 %v1088, %v1120
        %v1160 = vmul.f32 %v1089, %v1120
        %v1161 = vmul.f32 %v1090, %v1120
        %v1162 = vmul.f32 %v1091, %v1120
        %v1163 = vmul.f32 %v1092, %v1120
        %v1164 = vmul.f32 %v1093, %v1120
        %v1165 = vmul.f32 %v1094, %v1120
        %v1166 = vmul.f32 %v1095, %v1120
        %v1167 = vmul.f32 %v1096, %v1120
        %v1168 = vmul.f32 %v1097, %v1120
        %v1169 = vmul.f32 %v1098, %v1120
        %v1170 = vmul.f32 %v1099, %v1120
        %v1171 = vmul.f32 %v1100, %v1120
        %v1172 = vmul.f32 %v1101, %v1120
        %v1173 = vmul.f32 %v1102, %v1120
        %v1174 = vmul.f32 %v1103, %v1120
        %v1175 = vmul.f32 %v1104, %v1120
        %v1176 = vmul.f32 %v1105, %v1120
        %v1177 = vmul.f32 %v1106, %v1120
        %v1178 = vmul.f32 %v1107, %v1120
        %v1179 = vmul.f32 %v1108, %v1120
        %v1180 = vmul.f32 %v1109, %v1120
        %v1181 = vmul.f32 %v1110, %v1120
        %v1182 = vmul.f32 %v1111, %v1120
        %v1183 = vmul.f32 %v1112, %v1120
        %v1184 = vmul.f32 %v1113, %v1120
        %v1185 = vmul.f32 %v1114, %v1120
        %v1186 = vld [vmem:[%s4] sm:$0x1]
        %v1188 = vlaneseq
        %v1189 = vshrl.u32 %v1188, 7
        %v1190 = vsub.s32 0, %v1189
        %v1191 = vrot.slane %v1186, %v1190
        %v1193 = vadd.f32 %v1122, %v1191
        %v1194 = vadd.f32 %v1123, %v1191
        %v1195 = vadd.f32 %v1124, %v1191
        %v1196 = vadd.f32 %v1125, %v1191
        %v1197 = vadd.f32 %v1126, %v1191
        %v1198 = vadd.f32 %v1127, %v1191
        %v1199 = vadd.f32 %v1128, %v1191
        %v1200 = vadd.f32 %v1129, %v1191
        %v1201 = vadd.f32 %v1130, %v1191
        %v1202 = vadd.f32 %v1131, %v1191
        %v1203 = vadd.f32 %v1132, %v1191
        %v1204 = vadd.f32 %v1133, %v1191
        %v1205 = vadd.f32 %v1134, %v1191
        %v1206 = vadd.f32 %v1135, %v1191
        %v1207 = vadd.f32 %v1136, %v1191
        %v1208 = vadd.f32 %v1137, %v1191
        %v1209 = vadd.f32 %v1138, %v1191
        %v1210 = vadd.f32 %v1139, %v1191
        %v1211 = vadd.f32 %v1140, %v1191
        %v1212 = vadd.f32 %v1141, %v1191
        %v1213 = vadd.f32 %v1142, %v1191
        %v1214 = vadd.f32 %v1143, %v1191
        %v1215 = vadd.f32 %v1144, %v1191
        %v1216 = vadd.f32 %v1145, %v1191
        %v1217 = vadd.f32 %v1146, %v1191
        %v1218 = vadd.f32 %v1147, %v1191
        %v1219 = vadd.f32 %v1148, %v1191
        %v1220 = vadd.f32 %v1149, %v1191
        %v1221 = vadd.f32 %v1150, %v1191
        %v1222 = vadd.f32 %v1151, %v1191
        %v1223 = vadd.f32 %v1152, %v1191
        %v1224 = vadd.f32 %v1153, %v1191
        %v1225 = vadd.f32 %v1154, %v1191
        %v1226 = vadd.f32 %v1155, %v1191
        %v1227 = vadd.f32 %v1156, %v1191
        %v1228 = vadd.f32 %v1157, %v1191
        %v1229 = vadd.f32 %v1158, %v1191
        %v1230 = vadd.f32 %v1159, %v1191
        %v1231 = vadd.f32 %v1160, %v1191
        %v1232 = vadd.f32 %v1161, %v1191
        %v1233 = vadd.f32 %v1162, %v1191
        %v1234 = vadd.f32 %v1163, %v1191
        %v1235 = vadd.f32 %v1164, %v1191
        %v1236 = vadd.f32 %v1165, %v1191
        %v1237 = vadd.f32 %v1166, %v1191
        %v1238 = vadd.f32 %v1167, %v1191
        %v1239 = vadd.f32 %v1168, %v1191
        %v1240 = vadd.f32 %v1169, %v1191
        %v1241 = vadd.f32 %v1170, %v1191
        %v1242 = vadd.f32 %v1171, %v1191
        %v1243 = vadd.f32 %v1172, %v1191
        %v1244 = vadd.f32 %v1173, %v1191
        %v1245 = vadd.f32 %v1174, %v1191
        %v1246 = vadd.f32 %v1175, %v1191
        %v1247 = vadd.f32 %v1176, %v1191
        %v1248 = vadd.f32 %v1177, %v1191
        %v1249 = vadd.f32 %v1178, %v1191
        %v1250 = vadd.f32 %v1179, %v1191
        %v1251 = vadd.f32 %v1180, %v1191
        %v1252 = vadd.f32 %v1181, %v1191
        %v1253 = vadd.f32 %v1182, %v1191
        %v1254 = vadd.f32 %v1183, %v1191
        %v1255 = vadd.f32 %v1184, %v1191
        %v1256 = vadd.f32 %v1185, %v1191
        %v1257 = vld [vmem:[%s340] sm:$0x1]
        %v1259 = vlaneseq
        %v1260 = vshrl.u32 %v1259, 7
        %v1261 = vsub.s32 0, %v1260
        %v1262 = vrot.slane %v1257, %v1261
        %v1264 = vmul.f32 %v1193, %v1262
        %v1265 = vmul.f32 %v1194, %v1262
        %v1266 = vmul.f32 %v1195, %v1262
        %v1267 = vmul.f32 %v1196, %v1262
        %v1268 = vmul.f32 %v1197, %v1262
        %v1269 = vmul.f32 %v1198, %v1262
        %v1270 = vmul.f32 %v1199, %v1262
        %v1271 = vmul.f32 %v1200, %v1262
        %v1272 = vmul.f32 %v1201, %v1262
        %v1273 = vmul.f32 %v1202, %v1262
        %v1274 = vmul.f32 %v1203, %v1262
        %v1275 = vmul.f32 %v1204, %v1262
        %v1276 = vmul.f32 %v1205, %v1262
        %v1277 = vmul.f32 %v1206, %v1262
        %v1278 = vmul.f32 %v1207, %v1262
        %v1279 = vmul.f32 %v1208, %v1262
        %v1280 = vmul.f32 %v1209, %v1262
        %v1281 = vmul.f32 %v1210, %v1262
        %v1282 = vmul.f32 %v1211, %v1262
        %v1283 = vmul.f32 %v1212, %v1262
        %v1284 = vmul.f32 %v1213, %v1262
        %v1285 = vmul.f32 %v1214, %v1262
        %v1286 = vmul.f32 %v1215, %v1262
        %v1287 = vmul.f32 %v1216, %v1262
        %v1288 = vmul.f32 %v1217, %v1262
        %v1289 = vmul.f32 %v1218, %v1262
        %v1290 = vmul.f32 %v1219, %v1262
        %v1291 = vmul.f32 %v1220, %v1262
        %v1292 = vmul.f32 %v1221, %v1262
        %v1293 = vmul.f32 %v1222, %v1262
        %v1294 = vmul.f32 %v1223, %v1262
        %v1295 = vmul.f32 %v1224, %v1262
        %v1296 = vmul.f32 %v1225, %v1262
        %v1297 = vmul.f32 %v1226, %v1262
        %v1298 = vmul.f32 %v1227, %v1262
        %v1299 = vmul.f32 %v1228, %v1262
        %v1300 = vmul.f32 %v1229, %v1262
        %v1301 = vmul.f32 %v1230, %v1262
        %v1302 = vmul.f32 %v1231, %v1262
        %v1303 = vmul.f32 %v1232, %v1262
        %v1304 = vmul.f32 %v1233, %v1262
        %v1305 = vmul.f32 %v1234, %v1262
        %v1306 = vmul.f32 %v1235, %v1262
        %v1307 = vmul.f32 %v1236, %v1262
        %v1308 = vmul.f32 %v1237, %v1262
        %v1309 = vmul.f32 %v1238, %v1262
        %v1310 = vmul.f32 %v1239, %v1262
        %v1311 = vmul.f32 %v1240, %v1262
        %v1312 = vmul.f32 %v1241, %v1262
        %v1313 = vmul.f32 %v1242, %v1262
        %v1314 = vmul.f32 %v1243, %v1262
        %v1315 = vmul.f32 %v1244, %v1262
        %v1316 = vmul.f32 %v1245, %v1262
        %v1317 = vmul.f32 %v1246, %v1262
        %v1318 = vmul.f32 %v1247, %v1262
        %v1319 = vmul.f32 %v1248, %v1262
        %v1320 = vmul.f32 %v1249, %v1262
        %v1321 = vmul.f32 %v1250, %v1262
        %v1322 = vmul.f32 %v1251, %v1262
        %v1323 = vmul.f32 %v1252, %v1262
        %v1324 = vmul.f32 %v1253, %v1262
        %v1325 = vmul.f32 %v1254, %v1262
        %v1326 = vmul.f32 %v1255, %v1262
        %v1327 = vmul.f32 %v1256, %v1262
        %v1328 = vld [vmem:[%s343] sm:$0x1]
        %v1330 = vlaneseq
        %v1331 = vshrl.u32 %v1330, 7
        %v1332 = vsub.s32 0, %v1331
        %v1333 = vrot.slane %v1328, %v1332
        %v1335 = vadd.f32 %v1264, %v1333
        %v1336 = vadd.f32 %v1265, %v1333
        %v1337 = vadd.f32 %v1266, %v1333
        %v1338 = vadd.f32 %v1267, %v1333
        %v1339 = vadd.f32 %v1268, %v1333
        %v1340 = vadd.f32 %v1269, %v1333
        %v1341 = vadd.f32 %v1270, %v1333
        %v1342 = vadd.f32 %v1271, %v1333
        %v1343 = vadd.f32 %v1272, %v1333
        %v1344 = vadd.f32 %v1273, %v1333
        %v1345 = vadd.f32 %v1274, %v1333
        %v1346 = vadd.f32 %v1275, %v1333
        %v1347 = vadd.f32 %v1276, %v1333
        %v1348 = vadd.f32 %v1277, %v1333
        %v1349 = vadd.f32 %v1278, %v1333
        %v1350 = vadd.f32 %v1279, %v1333
        %v1351 = vadd.f32 %v1280, %v1333
        %v1352 = vadd.f32 %v1281, %v1333
        %v1353 = vadd.f32 %v1282, %v1333
        %v1354 = vadd.f32 %v1283, %v1333
        %v1355 = vadd.f32 %v1284, %v1333
        %v1356 = vadd.f32 %v1285, %v1333
        %v1357 = vadd.f32 %v1286, %v1333
        %v1358 = vadd.f32 %v1287, %v1333
        %v1359 = vadd.f32 %v1288, %v1333
        %v1360 = vadd.f32 %v1289, %v1333
        %v1361 = vadd.f32 %v1290, %v1333
        %v1362 = vadd.f32 %v1291, %v1333
        %v1363 = vadd.f32 %v1292, %v1333
        %v1364 = vadd.f32 %v1293, %v1333
        %v1365 = vadd.f32 %v1294, %v1333
        %v1366 = vadd.f32 %v1295, %v1333
        %v1367 = vadd.f32 %v1296, %v1333
        %v1368 = vadd.f32 %v1297, %v1333
        %v1369 = vadd.f32 %v1298, %v1333
        %v1370 = vadd.f32 %v1299, %v1333
        %v1371 = vadd.f32 %v1300, %v1333
        %v1372 = vadd.f32 %v1301, %v1333
        %v1373 = vadd.f32 %v1302, %v1333
        %v1374 = vadd.f32 %v1303, %v1333
        %v1375 = vadd.f32 %v1304, %v1333
        %v1376 = vadd.f32 %v1305, %v1333
        %v1377 = vadd.f32 %v1306, %v1333
        %v1378 = vadd.f32 %v1307, %v1333
        %v1379 = vadd.f32 %v1308, %v1333
        %v1380 = vadd.f32 %v1309, %v1333
        %v1381 = vadd.f32 %v1310, %v1333
        %v1382 = vadd.f32 %v1311, %v1333
        %v1383 = vadd.f32 %v1312, %v1333
        %v1384 = vadd.f32 %v1313, %v1333
        %v1385 = vadd.f32 %v1314, %v1333
        %v1386 = vadd.f32 %v1315, %v1333
        %v1387 = vadd.f32 %v1316, %v1333
        %v1388 = vadd.f32 %v1317, %v1333
        %v1389 = vadd.f32 %v1318, %v1333
        %v1390 = vadd.f32 %v1319, %v1333
        %v1391 = vadd.f32 %v1320, %v1333
        %v1392 = vadd.f32 %v1321, %v1333
        %v1393 = vadd.f32 %v1322, %v1333
        %v1394 = vadd.f32 %v1323, %v1333
        %v1395 = vadd.f32 %v1324, %v1333
        %v1396 = vadd.f32 %v1325, %v1333
        %v1397 = vadd.f32 %v1326, %v1333
        %v1398 = vadd.f32 %v1327, %v1333
        %v1399 = vmul.f32 %v1335, 0.5
        %v1400 = vmul.f32 %v1336, 0.5
        %v1401 = vmul.f32 %v1337, 0.5
        %v1402 = vmul.f32 %v1338, 0.5
        %v1403 = vmul.f32 %v1339, 0.5
        %v1404 = vmul.f32 %v1340, 0.5
        %v1405 = vmul.f32 %v1341, 0.5
        %v1406 = vmul.f32 %v1342, 0.5
        %v1407 = vmul.f32 %v1343, 0.5
        %v1408 = vmul.f32 %v1344, 0.5
        %v1409 = vmul.f32 %v1345, 0.5
        %v1410 = vmul.f32 %v1346, 0.5
        %v1411 = vmul.f32 %v1347, 0.5
        %v1412 = vmul.f32 %v1348, 0.5
        %v1413 = vmul.f32 %v1349, 0.5
        %v1414 = vmul.f32 %v1350, 0.5
        %v1415 = vmul.f32 %v1351, 0.5
        %v1416 = vmul.f32 %v1352, 0.5
        %v1417 = vmul.f32 %v1353, 0.5
        %v1418 = vmul.f32 %v1354, 0.5
        %v1419 = vmul.f32 %v1355, 0.5
        %v1420 = vmul.f32 %v1356, 0.5
        %v1421 = vmul.f32 %v1357, 0.5
        %v1422 = vmul.f32 %v1358, 0.5
        %v1423 = vmul.f32 %v1359, 0.5
        %v1424 = vmul.f32 %v1360, 0.5
        %v1425 = vmul.f32 %v1361, 0.5
        %v1426 = vmul.f32 %v1362, 0.5
        %v1427 = vmul.f32 %v1363, 0.5
        %v1428 = vmul.f32 %v1364, 0.5
        %v1429 = vmul.f32 %v1365, 0.5
        %v1430 = vmul.f32 %v1366, 0.5
        %v1431 = vmul.f32 %v1367, 0.5
        %v1432 = vmul.f32 %v1368, 0.5
        %v1433 = vmul.f32 %v1369, 0.5
        %v1434 = vmul.f32 %v1370, 0.5
        %v1435 = vmul.f32 %v1371, 0.5
        %v1436 = vmul.f32 %v1372, 0.5
        %v1437 = vmul.f32 %v1373, 0.5
        %v1438 = vmul.f32 %v1374, 0.5
        %v1439 = vmul.f32 %v1375, 0.5
        %v1440 = vmul.f32 %v1376, 0.5
        %v1441 = vmul.f32 %v1377, 0.5
        %v1442 = vmul.f32 %v1378, 0.5
        %v1443 = vmul.f32 %v1379, 0.5
        %v1444 = vmul.f32 %v1380, 0.5
        %v1445 = vmul.f32 %v1381, 0.5
        %v1446 = vmul.f32 %v1382, 0.5
        %v1447 = vmul.f32 %v1383, 0.5
        %v1448 = vmul.f32 %v1384, 0.5
        %v1449 = vmul.f32 %v1385, 0.5
        %v1450 = vmul.f32 %v1386, 0.5
        %v1451 = vmul.f32 %v1387, 0.5
        %v1452 = vmul.f32 %v1388, 0.5
        %v1453 = vmul.f32 %v1389, 0.5
        %v1454 = vmul.f32 %v1390, 0.5
        %v1455 = vmul.f32 %v1391, 0.5
        %v1456 = vmul.f32 %v1392, 0.5
        %v1457 = vmul.f32 %v1393, 0.5
        %v1458 = vmul.f32 %v1394, 0.5
        %v1459 = vmul.f32 %v1395, 0.5
        %v1460 = vmul.f32 %v1396, 0.5
        %v1461 = vmul.f32 %v1397, 0.5
        %v1462 = vmul.f32 %v1398, 0.5
        %v1463 = vtanh.pop %v1399
        %v1464 = vtanh.pop %v1400
        %v1465 = vtanh.pop %v1401
        %v1466 = vtanh.pop %v1402
        %v1467 = vtanh.pop %v1403
        %v1468 = vtanh.pop %v1404
        %v1469 = vtanh.pop %v1405
        %v1470 = vtanh.pop %v1406
        %v1471 = vtanh.pop %v1407
        %v1472 = vtanh.pop %v1408
        %v1473 = vtanh.pop %v1409
        %v1474 = vtanh.pop %v1410
        %v1475 = vtanh.pop %v1411
        %v1476 = vtanh.pop %v1412
        %v1477 = vtanh.pop %v1413
        %v1478 = vtanh.pop %v1414
        %v1479 = vtanh.pop %v1415
        %v1480 = vtanh.pop %v1416
        %v1481 = vtanh.pop %v1417
        %v1482 = vtanh.pop %v1418
        %v1483 = vtanh.pop %v1419
        %v1484 = vtanh.pop %v1420
        %v1485 = vtanh.pop %v1421
        %v1486 = vtanh.pop %v1422
        %v1487 = vtanh.pop %v1423
        %v1488 = vtanh.pop %v1424
        %v1489 = vtanh.pop %v1425
        %v1490 = vtanh.pop %v1426
        %v1491 = vtanh.pop %v1427
        %v1492 = vtanh.pop %v1428
        %v1493 = vtanh.pop %v1429
        %v1494 = vtanh.pop %v1430
        %v1495 = vtanh.pop %v1431
        %v1496 = vtanh.pop %v1432
        %v1497 = vtanh.pop %v1433
        %v1498 = vtanh.pop %v1434
        %v1499 = vtanh.pop %v1435
        %v1500 = vtanh.pop %v1436
        %v1501 = vtanh.pop %v1437
        %v1502 = vtanh.pop %v1438
        %v1503 = vtanh.pop %v1439
        %v1504 = vtanh.pop %v1440
        %v1505 = vtanh.pop %v1441
        %v1506 = vtanh.pop %v1442
        %v1507 = vtanh.pop %v1443
        %v1508 = vtanh.pop %v1444
        %v1509 = vtanh.pop %v1445
        %v1510 = vtanh.pop %v1446
        %v1511 = vtanh.pop %v1447
        %v1512 = vtanh.pop %v1448
        %v1513 = vtanh.pop %v1449
        %v1514 = vtanh.pop %v1450
        %v1515 = vtanh.pop %v1451
        %v1516 = vtanh.pop %v1452
        %v1517 = vtanh.pop %v1453
        %v1518 = vtanh.pop %v1454
        %v1519 = vtanh.pop %v1455
        %v1520 = vtanh.pop %v1456
        %v1521 = vtanh.pop %v1457
        %v1522 = vtanh.pop %v1458
        %v1523 = vtanh.pop %v1459
        %v1524 = vtanh.pop %v1460
        %v1525 = vtanh.pop %v1461
        %v1526 = vtanh.pop %v1462
        %v1527 = vmul.f32 %v1463, 0.5
        %v1528 = vmul.f32 %v1464, 0.5
        %v1529 = vmul.f32 %v1465, 0.5
        %v1530 = vmul.f32 %v1466, 0.5
        %v1531 = vmul.f32 %v1467, 0.5
        %v1532 = vmul.f32 %v1468, 0.5
        %v1533 = vmul.f32 %v1469, 0.5
        %v1534 = vmul.f32 %v1470, 0.5
        %v1535 = vmul.f32 %v1471, 0.5
        %v1536 = vmul.f32 %v1472, 0.5
        %v1537 = vmul.f32 %v1473, 0.5
        %v1538 = vmul.f32 %v1474, 0.5
        %v1539 = vmul.f32 %v1475, 0.5
        %v1540 = vmul.f32 %v1476, 0.5
        %v1541 = vmul.f32 %v1477, 0.5
        %v1542 = vmul.f32 %v1478, 0.5
        %v1543 = vmul.f32 %v1479, 0.5
        %v1544 = vmul.f32 %v1480, 0.5
        %v1545 = vmul.f32 %v1481, 0.5
        %v1546 = vmul.f32 %v1482, 0.5
        %v1547 = vmul.f32 %v1483, 0.5
        %v1548 = vmul.f32 %v1484, 0.5
        %v1549 = vmul.f32 %v1485, 0.5
        %v1550 = vmul.f32 %v1486, 0.5
        %v1551 = vmul.f32 %v1487, 0.5
        %v1552 = vmul.f32 %v1488, 0.5
        %v1553 = vmul.f32 %v1489, 0.5
        %v1554 = vmul.f32 %v1490, 0.5
        %v1555 = vmul.f32 %v1491, 0.5
        %v1556 = vmul.f32 %v1492, 0.5
        %v1557 = vmul.f32 %v1493, 0.5
        %v1558 = vmul.f32 %v1494, 0.5
        %v1559 = vmul.f32 %v1495, 0.5
        %v1560 = vmul.f32 %v1496, 0.5
        %v1561 = vmul.f32 %v1497, 0.5
        %v1562 = vmul.f32 %v1498, 0.5
        %v1563 = vmul.f32 %v1499, 0.5
        %v1564 = vmul.f32 %v1500, 0.5
        %v1565 = vmul.f32 %v1501, 0.5
        %v1566 = vmul.f32 %v1502, 0.5
        %v1567 = vmul.f32 %v1503, 0.5
        %v1568 = vmul.f32 %v1504, 0.5
        %v1569 = vmul.f32 %v1505, 0.5
        %v1570 = vmul.f32 %v1506, 0.5
        %v1571 = vmul.f32 %v1507, 0.5
        %v1572 = vmul.f32 %v1508, 0.5
        %v1573 = vmul.f32 %v1509, 0.5
        %v1574 = vmul.f32 %v1510, 0.5
        %v1575 = vmul.f32 %v1511, 0.5
        %v1576 = vmul.f32 %v1512, 0.5
        %v1577 = vmul.f32 %v1513, 0.5
        %v1578 = vmul.f32 %v1514, 0.5
        %v1579 = vmul.f32 %v1515, 0.5
        %v1580 = vmul.f32 %v1516, 0.5
        %v1581 = vmul.f32 %v1517, 0.5
        %v1582 = vmul.f32 %v1518, 0.5
        %v1583 = vmul.f32 %v1519, 0.5
        %v1584 = vmul.f32 %v1520, 0.5
        %v1585 = vmul.f32 %v1521, 0.5
        %v1586 = vmul.f32 %v1522, 0.5
        %v1587 = vmul.f32 %v1523, 0.5
        %v1588 = vmul.f32 %v1524, 0.5
        %v1589 = vmul.f32 %v1525, 0.5
        %v1590 = vmul.f32 %v1526, 0.5
        %v1591 = vadd.f32 %v1527, 0.5
        %v1592 = vadd.f32 %v1528, 0.5
        %v1593 = vadd.f32 %v1529, 0.5
        %v1594 = vadd.f32 %v1530, 0.5
        %v1595 = vadd.f32 %v1531, 0.5
        %v1596 = vadd.f32 %v1532, 0.5
        %v1597 = vadd.f32 %v1533, 0.5
        %v1598 = vadd.f32 %v1534, 0.5
        %v1599 = vadd.f32 %v1535, 0.5
        %v1600 = vadd.f32 %v1536, 0.5
        %v1601 = vadd.f32 %v1537, 0.5
        %v1602 = vadd.f32 %v1538, 0.5
        %v1603 = vadd.f32 %v1539, 0.5
        %v1604 = vadd.f32 %v1540, 0.5
        %v1605 = vadd.f32 %v1541, 0.5
        %v1606 = vadd.f32 %v1542, 0.5
        %v1607 = vadd.f32 %v1543, 0.5
        %v1608 = vadd.f32 %v1544, 0.5
        %v1609 = vadd.f32 %v1545, 0.5
        %v1610 = vadd.f32 %v1546, 0.5
        %v1611 = vadd.f32 %v1547, 0.5
        %v1612 = vadd.f32 %v1548, 0.5
        %v1613 = vadd.f32 %v1549, 0.5
        %v1614 = vadd.f32 %v1550, 0.5
        %v1615 = vadd.f32 %v1551, 0.5
        %v1616 = vadd.f32 %v1552, 0.5
        %v1617 = vadd.f32 %v1553, 0.5
        %v1618 = vadd.f32 %v1554, 0.5
        %v1619 = vadd.f32 %v1555, 0.5
        %v1620 = vadd.f32 %v1556, 0.5
        %v1621 = vadd.f32 %v1557, 0.5
        %v1622 = vadd.f32 %v1558, 0.5
        %v1623 = vadd.f32 %v1559, 0.5
        %v1624 = vadd.f32 %v1560, 0.5
        %v1625 = vadd.f32 %v1561, 0.5
        %v1626 = vadd.f32 %v1562, 0.5
        %v1627 = vadd.f32 %v1563, 0.5
        %v1628 = vadd.f32 %v1564, 0.5
        %v1629 = vadd.f32 %v1565, 0.5
        %v1630 = vadd.f32 %v1566, 0.5
        %v1631 = vadd.f32 %v1567, 0.5
        %v1632 = vadd.f32 %v1568, 0.5
        %v1633 = vadd.f32 %v1569, 0.5
        %v1634 = vadd.f32 %v1570, 0.5
        %v1635 = vadd.f32 %v1571, 0.5
        %v1636 = vadd.f32 %v1572, 0.5
        %v1637 = vadd.f32 %v1573, 0.5
        %v1638 = vadd.f32 %v1574, 0.5
        %v1639 = vadd.f32 %v1575, 0.5
        %v1640 = vadd.f32 %v1576, 0.5
        %v1641 = vadd.f32 %v1577, 0.5
        %v1642 = vadd.f32 %v1578, 0.5
        %v1643 = vadd.f32 %v1579, 0.5
        %v1644 = vadd.f32 %v1580, 0.5
        %v1645 = vadd.f32 %v1581, 0.5
        %v1646 = vadd.f32 %v1582, 0.5
        %v1647 = vadd.f32 %v1583, 0.5
        %v1648 = vadd.f32 %v1584, 0.5
        %v1649 = vadd.f32 %v1585, 0.5
        %v1650 = vadd.f32 %v1586, 0.5
        %v1651 = vadd.f32 %v1587, 0.5
        %v1652 = vadd.f32 %v1588, 0.5
        %v1653 = vadd.f32 %v1589, 0.5
        %v1654 = vadd.f32 %v1590, 0.5
        %v1655 = vmul.f32 %v1335, %v1591
        %v1656 = vmul.f32 %v1336, %v1592
        %v1657 = vmul.f32 %v1337, %v1593
        %v1658 = vmul.f32 %v1338, %v1594
        %v1659 = vmul.f32 %v1339, %v1595
        %v1660 = vmul.f32 %v1340, %v1596
        %v1661 = vmul.f32 %v1341, %v1597
        %v1662 = vmul.f32 %v1342, %v1598
        %v1663 = vmul.f32 %v1343, %v1599
        %v1664 = vmul.f32 %v1344, %v1600
        %v1665 = vmul.f32 %v1345, %v1601
        %v1666 = vmul.f32 %v1346, %v1602
        %v1667 = vmul.f32 %v1347, %v1603
        %v1668 = vmul.f32 %v1348, %v1604
        %v1669 = vmul.f32 %v1349, %v1605
        %v1670 = vmul.f32 %v1350, %v1606
        %v1671 = vmul.f32 %v1351, %v1607
        %v1672 = vmul.f32 %v1352, %v1608
        %v1673 = vmul.f32 %v1353, %v1609
        %v1674 = vmul.f32 %v1354, %v1610
        %v1675 = vmul.f32 %v1355, %v1611
        %v1676 = vmul.f32 %v1356, %v1612
        %v1677 = vmul.f32 %v1357, %v1613
        %v1678 = vmul.f32 %v1358, %v1614
        %v1679 = vmul.f32 %v1359, %v1615
        %v1680 = vmul.f32 %v1360, %v1616
        %v1681 = vmul.f32 %v1361, %v1617
        %v1682 = vmul.f32 %v1362, %v1618
        %v1683 = vmul.f32 %v1363, %v1619
        %v1684 = vmul.f32 %v1364, %v1620
        %v1685 = vmul.f32 %v1365, %v1621
        %v1686 = vmul.f32 %v1366, %v1622
        %v1687 = vmul.f32 %v1367, %v1623
        %v1688 = vmul.f32 %v1368, %v1624
        %v1689 = vmul.f32 %v1369, %v1625
        %v1690 = vmul.f32 %v1370, %v1626
        %v1691 = vmul.f32 %v1371, %v1627
        %v1692 = vmul.f32 %v1372, %v1628
        %v1693 = vmul.f32 %v1373, %v1629
        %v1694 = vmul.f32 %v1374, %v1630
        %v1695 = vmul.f32 %v1375, %v1631
        %v1696 = vmul.f32 %v1376, %v1632
        %v1697 = vmul.f32 %v1377, %v1633
        %v1698 = vmul.f32 %v1378, %v1634
        %v1699 = vmul.f32 %v1379, %v1635
        %v1700 = vmul.f32 %v1380, %v1636
        %v1701 = vmul.f32 %v1381, %v1637
        %v1702 = vmul.f32 %v1382, %v1638
        %v1703 = vmul.f32 %v1383, %v1639
        %v1704 = vmul.f32 %v1384, %v1640
        %v1705 = vmul.f32 %v1385, %v1641
        %v1706 = vmul.f32 %v1386, %v1642
        %v1707 = vmul.f32 %v1387, %v1643
        %v1708 = vmul.f32 %v1388, %v1644
        %v1709 = vmul.f32 %v1389, %v1645
        %v1710 = vmul.f32 %v1390, %v1646
        %v1711 = vmul.f32 %v1391, %v1647
        %v1712 = vmul.f32 %v1392, %v1648
        %v1713 = vmul.f32 %v1393, %v1649
        %v1714 = vmul.f32 %v1394, %v1650
        %v1715 = vmul.f32 %v1395, %v1651
        %v1716 = vmul.f32 %v1396, %v1652
        %v1717 = vmul.f32 %v1397, %v1653
        %v1718 = vmul.f32 %v1398, %v1654
        %v1719 = vpack.c.bf16 %v1656, %v1655
        %v1720 = vpack.c.bf16 %v1658, %v1657
        %v1721 = vpack.c.bf16 %v1660, %v1659
        %v1722 = vpack.c.bf16 %v1662, %v1661
        %v1723 = vpack.c.bf16 %v1664, %v1663
        %v1724 = vpack.c.bf16 %v1666, %v1665
        %v1725 = vpack.c.bf16 %v1668, %v1667
        %v1726 = vpack.c.bf16 %v1670, %v1669
        %v1727 = vpack.c.bf16 %v1672, %v1671
        %v1728 = vpack.c.bf16 %v1674, %v1673
        %v1729 = vpack.c.bf16 %v1676, %v1675
        %v1730 = vpack.c.bf16 %v1678, %v1677
        %v1731 = vpack.c.bf16 %v1680, %v1679
        %v1732 = vpack.c.bf16 %v1682, %v1681
        %v1733 = vpack.c.bf16 %v1684, %v1683
        %v1734 = vpack.c.bf16 %v1686, %v1685
        %v1735 = vpack.c.bf16 %v1688, %v1687
        %v1736 = vpack.c.bf16 %v1690, %v1689
        %v1737 = vpack.c.bf16 %v1692, %v1691
        %v1738 = vpack.c.bf16 %v1694, %v1693
        %v1739 = vpack.c.bf16 %v1696, %v1695
        %v1740 = vpack.c.bf16 %v1698, %v1697
        %v1741 = vpack.c.bf16 %v1700, %v1699
        %v1742 = vpack.c.bf16 %v1702, %v1701
        %v1743 = vpack.c.bf16 %v1704, %v1703
        %v1744 = vpack.c.bf16 %v1706, %v1705
        %v1745 = vpack.c.bf16 %v1708, %v1707
        %v1746 = vpack.c.bf16 %v1710, %v1709
        %v1747 = vpack.c.bf16 %v1712, %v1711
        %v1748 = vpack.c.bf16 %v1714, %v1713
        %v1749 = vpack.c.bf16 %v1716, %v1715
        %v1750 = vpack.c.bf16 %v1718, %v1717
        %v1751 = vld [vmem:[%s5] sm:$0xf]
        %v1752 = vld [vmem:[%s5 + $0x4] sm:$0xf]
        %v1753 = vld [vmem:[%s5 + $0x8] sm:$0xf]
        %v1754 = vld [vmem:[%s5 + $0xc] sm:$0xf]
        %v1755 = vld [vmem:[%s5 + $0x10] sm:$0xf]
        %v1756 = vld [vmem:[%s5 + $0x14] sm:$0xf]
        %v1757 = vld [vmem:[%s5 + $0x18] sm:$0xf]
        %v1758 = vld [vmem:[%s5 + $0x1c] sm:$0xf]
        %v1759 = vld [vmem:[%s5 + $0x20] sm:$0xf]
        %v1760 = vld [vmem:[%s5 + $0x24] sm:$0xf]
        %v1761 = vld [vmem:[%s5 + $0x28] sm:$0xf]
        %v1762 = vld [vmem:[%s5 + $0x2c] sm:$0xf]
        %v1763 = vld [vmem:[%s5 + $0x30] sm:$0xf]
        %v1764 = vld [vmem:[%s5 + $0x34] sm:$0xf]
        %v1765 = vld [vmem:[%s5 + $0x38] sm:$0xf]
        %v1766 = vld [vmem:[%s5 + $0x3c] sm:$0xf]
        %v1767 = vld [vmem:[%s6] sm:$0x1]
        %v1769 = vlaneseq
        %v1770 = vshrl.u32 %v1769, 7
        %v1771 = vsub.s32 0, %v1770
        %v1772 = vrot.slane %v1767, %v1771
        %v1790 = vunpack.c.l.b16 %v1751
        %v1791 = vunpack.c.l.b16 %v1752
        %v1792 = vunpack.c.l.b16 %v1753
        %v1793 = vunpack.c.l.b16 %v1754
        %v1794 = vunpack.c.l.b16 %v1755
        %v1795 = vunpack.c.l.b16 %v1756
        %v1796 = vunpack.c.l.b16 %v1757
        %v1797 = vunpack.c.l.b16 %v1758
        %v1798 = vunpack.c.l.b16 %v1759
        %v1799 = vunpack.c.l.b16 %v1760
        %v1800 = vunpack.c.l.b16 %v1761
        %v1801 = vunpack.c.l.b16 %v1762
        %v1802 = vunpack.c.l.b16 %v1763
        %v1803 = vunpack.c.l.b16 %v1764
        %v1804 = vunpack.c.l.b16 %v1765
        %v1805 = vunpack.c.l.b16 %v1766
        %v1806 = vpack.c.b16 %v1791, %v1790
        %v1807 = vpack.c.b16 %v1793, %v1792
        %v1808 = vpack.c.b16 %v1795, %v1794
        %v1809 = vpack.c.b16 %v1797, %v1796
        %v1810 = vpack.c.b16 %v1799, %v1798
        %v1811 = vpack.c.b16 %v1801, %v1800
        %v1812 = vpack.c.b16 %v1803, %v1802
        %v1813 = vpack.c.b16 %v1805, %v1804
        %1822 = vmatprep.subr.bf16.mxu0 0
        %1823 = vmatpush1.bf16.msra.mxu0 %v1813
        %1824 = vmatprep.subr.bf16.mxu0 0
        %1825 = vmatpush1.bf16.msra.mxu0 %v1812
        %1826 = vmatprep.subr.bf16.mxu0 0
        %1827 = vmatpush1.bf16.msra.mxu0 %v1811
        %1828 = vmatprep.subr.bf16.mxu0 0
        %1829 = vmatpush1.bf16.msra.mxu0 %v1810
        %1830 = vmatprep.subr.bf16.mxu0 0
        %1831 = vmatpush1.bf16.msra.mxu0 %v1809
        %1832 = vmatprep.subr.bf16.mxu0 0
        %1833 = vmatpush1.bf16.msra.mxu0 %v1808
        %1834 = vmatprep.subr.bf16.mxu0 0
        %1835 = vmatpush1.bf16.msra.mxu0 %v1807
        %1836 = vmatprep.subr.bf16.mxu0 0
        %1837 = vmatpush1.bf16.msra.mxu0 %v1806
        %1838 = vmatprep.subr.bf16.mxu0 0
        %1839 = vmatpush2.bf16.msra.mxu0 0
        %1840 = vmatprep.subr.bf16.mxu0 0
        %1841 = vmatpush2.bf16.msra.mxu0 0
        %1842 = vmatprep.subr.bf16.mxu0 0
        %1843 = vmatpush2.bf16.msra.mxu0 0
        %1844 = vmatprep.subr.bf16.mxu0 0
        %1845 = vmatpush2.bf16.msra.mxu0 0
        %1846 = vmatprep.subr.bf16.mxu0 0
        %1847 = vmatpush2.bf16.msra.mxu0 0
        %1848 = vmatprep.subr.bf16.mxu0 0
        %1849 = vmatpush2.bf16.msra.mxu0 0
        %1850 = vmatprep.subr.bf16.mxu0 0
        %1851 = vmatpush2.bf16.msra.mxu0 0
        %1852 = vmatprep.subr.bf16.mxu0 0
        %1853 = vmatpush2.bf16.msra.mxu0 0
        %1854 = vmatprep.mubr.bf16.mxu0 0
        %1855 = vmatmul.mubr.bf16.gmra.mxu0 %v1719
        %v1856 = vpop.f32.mrf.mxu0
        %v1857 = vadd.f32 %v1772, %v1856
        %v1858 = vpop.f32.mrf.mxu0
        %v1859 = vpop.f32.mrf.mxu0
        %v1860 = vadd.f32 %v1772, %v1859
        %v1861 = vpop.f32.mrf.mxu0
        %1862 = vmatprep.mubr.bf16.mxu0 0
        %1863 = vmatmul.mubr.bf16.gmra.mxu0 %v1720
        %v1864 = vpop.f32.mrf.mxu0
        %v1865 = vadd.f32 %v1772, %v1864
        %v1866 = vpop.f32.mrf.mxu0
        %v1867 = vpop.f32.mrf.mxu0
        %v1868 = vadd.f32 %v1772, %v1867
        %v1869 = vpop.f32.mrf.mxu0
        %1870 = vmatprep.mubr.bf16.mxu0 0
        %1871 = vmatmul.mubr.bf16.gmra.mxu0 %v1721
        %v1872 = vpop.f32.mrf.mxu0
        %v1873 = vadd.f32 %v1772, %v1872
        %v1874 = vpop.f32.mrf.mxu0
        %v1875 = vpop.f32.mrf.mxu0
        %v1876 = vadd.f32 %v1772, %v1875
        %v1877 = vpop.f32.mrf.mxu0
        %1878 = vmatprep.mubr.bf16.mxu0 0
        %1879 = vmatmul.mubr.bf16.gmra.mxu0 %v1722
        %v1880 = vpop.f32.mrf.mxu0
        %v1881 = vadd.f32 %v1772, %v1880
        %v1882 = vpop.f32.mrf.mxu0
        %v1883 = vpop.f32.mrf.mxu0
        %v1884 = vadd.f32 %v1772, %v1883
        %v1885 = vpop.f32.mrf.mxu0
        %1886 = vmatprep.mubr.bf16.mxu0 0
        %1887 = vmatmul.mubr.bf16.gmra.mxu0 %v1723
        %v1888 = vpop.f32.mrf.mxu0
        %v1889 = vadd.f32 %v1772, %v1888
        %v1890 = vpop.f32.mrf.mxu0
        %v1891 = vpop.f32.mrf.mxu0
        %v1892 = vadd.f32 %v1772, %v1891
        %v1893 = vpop.f32.mrf.mxu0
        %1894 = vmatprep.mubr.bf16.mxu0 0
        %1895 = vmatmul.mubr.bf16.gmra.mxu0 %v1724
        %v1896 = vpop.f32.mrf.mxu0
        %v1897 = vadd.f32 %v1772, %v1896
        %v1898 = vpop.f32.mrf.mxu0
        %v1899 = vpop.f32.mrf.mxu0
        %v1900 = vadd.f32 %v1772, %v1899
        %v1901 = vpop.f32.mrf.mxu0
        %1902 = vmatprep.mubr.bf16.mxu0 0
        %1903 = vmatmul.mubr.bf16.gmra.mxu0 %v1725
        %v1904 = vpop.f32.mrf.mxu0
        %v1905 = vadd.f32 %v1772, %v1904
        %v1906 = vpop.f32.mrf.mxu0
        %v1907 = vpop.f32.mrf.mxu0
        %v1908 = vadd.f32 %v1772, %v1907
        %v1909 = vpop.f32.mrf.mxu0
        %1910 = vmatprep.mubr.bf16.mxu0 0
        %1911 = vmatmul.mubr.bf16.gmra.mxu0 %v1726
        %v1912 = vpop.f32.mrf.mxu0
        %v1913 = vadd.f32 %v1772, %v1912
        %v1914 = vpop.f32.mrf.mxu0
        %v1915 = vpop.f32.mrf.mxu0
        %v1916 = vadd.f32 %v1772, %v1915
        %v1917 = vpop.f32.mrf.mxu0
        %1918 = vmatprep.mubr.bf16.mxu0 0
        %1919 = vmatmul.mubr.bf16.gmra.mxu0 %v1727
        %v1920 = vpop.f32.mrf.mxu0
        %v1921 = vadd.f32 %v1772, %v1920
        %v1922 = vpop.f32.mrf.mxu0
        %v1923 = vpop.f32.mrf.mxu0
        %v1924 = vadd.f32 %v1772, %v1923
        %v1925 = vpop.f32.mrf.mxu0
        %1926 = vmatprep.mubr.bf16.mxu0 0
        %1927 = vmatmul.mubr.bf16.gmra.mxu0 %v1728
        %v1928 = vpop.f32.mrf.mxu0
        %v1929 = vadd.f32 %v1772, %v1928
        %v1930 = vpop.f32.mrf.mxu0
        %v1931 = vpop.f32.mrf.mxu0
        %v1932 = vadd.f32 %v1772, %v1931
        %v1933 = vpop.f32.mrf.mxu0
        %1934 = vmatprep.mubr.bf16.mxu0 0
        %1935 = vmatmul.mubr.bf16.gmra.mxu0 %v1729
        %v1936 = vpop.f32.mrf.mxu0
        %v1937 = vadd.f32 %v1772, %v1936
        %v1938 = vpop.f32.mrf.mxu0
        %v1939 = vpop.f32.mrf.mxu0
        %v1940 = vadd.f32 %v1772, %v1939
        %v1941 = vpop.f32.mrf.mxu0
        %1942 = vmatprep.mubr.bf16.mxu0 0
        %1943 = vmatmul.mubr.bf16.gmra.mxu0 %v1730
        %v1944 = vpop.f32.mrf.mxu0
        %v1945 = vadd.f32 %v1772, %v1944
        %v1946 = vpop.f32.mrf.mxu0
        %v1947 = vpop.f32.mrf.mxu0
        %v1948 = vadd.f32 %v1772, %v1947
        %v1949 = vpop.f32.mrf.mxu0
        %1950 = vmatprep.mubr.bf16.mxu0 0
        %1951 = vmatmul.mubr.bf16.gmra.mxu0 %v1731
        %v1952 = vpop.f32.mrf.mxu0
        %v1953 = vadd.f32 %v1772, %v1952
        %v1954 = vpop.f32.mrf.mxu0
        %v1955 = vpop.f32.mrf.mxu0
        %v1956 = vadd.f32 %v1772, %v1955
        %v1957 = vpop.f32.mrf.mxu0
        %1958 = vmatprep.mubr.bf16.mxu0 0
        %1959 = vmatmul.mubr.bf16.gmra.mxu0 %v1732
        %v1960 = vpop.f32.mrf.mxu0
        %v1961 = vadd.f32 %v1772, %v1960
        %v1962 = vpop.f32.mrf.mxu0
        %v1963 = vpop.f32.mrf.mxu0
        %v1964 = vadd.f32 %v1772, %v1963
        %v1965 = vpop.f32.mrf.mxu0
        %1966 = vmatprep.mubr.bf16.mxu0 0
        %1967 = vmatmul.mubr.bf16.gmra.mxu0 %v1733
        %v1968 = vpop.f32.mrf.mxu0
        %v1969 = vadd.f32 %v1772, %v1968
        %v1970 = vpop.f32.mrf.mxu0
        %v1971 = vpop.f32.mrf.mxu0
        %v1972 = vadd.f32 %v1772, %v1971
        %v1973 = vpop.f32.mrf.mxu0
        %1974 = vmatprep.mubr.bf16.mxu0 0
        %1975 = vmatmul.mubr.bf16.gmra.mxu0 %v1734
        %v1976 = vpop.f32.mrf.mxu0
        %v1977 = vadd.f32 %v1772, %v1976
        %v1978 = vpop.f32.mrf.mxu0
        %v1979 = vpop.f32.mrf.mxu0
        %v1980 = vadd.f32 %v1772, %v1979
        %v1981 = vpop.f32.mrf.mxu0
        %1982 = vmatprep.mubr.bf16.mxu0 0
        %1983 = vmatmul.mubr.bf16.gmra.mxu0 %v1735
        %v1984 = vpop.f32.mrf.mxu0
        %v1985 = vadd.f32 %v1772, %v1984
        %v1986 = vpop.f32.mrf.mxu0
        %v1987 = vpop.f32.mrf.mxu0
        %v1988 = vadd.f32 %v1772, %v1987
        %v1989 = vpop.f32.mrf.mxu0
        %1990 = vmatprep.mubr.bf16.mxu0 0
        %1991 = vmatmul.mubr.bf16.gmra.mxu0 %v1736
        %v1992 = vpop.f32.mrf.mxu0
        %v1993 = vadd.f32 %v1772, %v1992
        %v1994 = vpop.f32.mrf.mxu0
        %v1995 = vpop.f32.mrf.mxu0
        %v1996 = vadd.f32 %v1772, %v1995
        %v1997 = vpop.f32.mrf.mxu0
        %1998 = vmatprep.mubr.bf16.mxu0 0
        %1999 = vmatmul.mubr.bf16.gmra.mxu0 %v1737
        %v2000 = vpop.f32.mrf.mxu0
        %v2001 = vadd.f32 %v1772, %v2000
        %v2002 = vpop.f32.mrf.mxu0
        %v2003 = vpop.f32.mrf.mxu0
        %v2004 = vadd.f32 %v1772, %v2003
        %v2005 = vpop.f32.mrf.mxu0
        %2006 = vmatprep.mubr.bf16.mxu0 0
        %2007 = vmatmul.mubr.bf16.gmra.mxu0 %v1738
        %v2008 = vpop.f32.mrf.mxu0
        %v2009 = vadd.f32 %v1772, %v2008
        %v2010 = vpop.f32.mrf.mxu0
        %v2011 = vpop.f32.mrf.mxu0
        %v2012 = vadd.f32 %v1772, %v2011
        %v2013 = vpop.f32.mrf.mxu0
        %2014 = vmatprep.mubr.bf16.mxu0 0
        %2015 = vmatmul.mubr.bf16.gmra.mxu0 %v1739
        %v2016 = vpop.f32.mrf.mxu0
        %v2017 = vadd.f32 %v1772, %v2016
        %v2018 = vpop.f32.mrf.mxu0
        %v2019 = vpop.f32.mrf.mxu0
        %v2020 = vadd.f32 %v1772, %v2019
        %v2021 = vpop.f32.mrf.mxu0
        %2022 = vmatprep.mubr.bf16.mxu0 0
        %2023 = vmatmul.mubr.bf16.gmra.mxu0 %v1740
        %v2024 = vpop.f32.mrf.mxu0
        %v2025 = vadd.f32 %v1772, %v2024
        %v2026 = vpop.f32.mrf.mxu0
        %v2027 = vpop.f32.mrf.mxu0
        %v2028 = vadd.f32 %v1772, %v2027
        %v2029 = vpop.f32.mrf.mxu0
        %2030 = vmatprep.mubr.bf16.mxu0 0
        %2031 = vmatmul.mubr.bf16.gmra.mxu0 %v1741
        %v2032 = vpop.f32.mrf.mxu0
        %v2033 = vadd.f32 %v1772, %v2032
        %v2034 = vpop.f32.mrf.mxu0
        %v2035 = vpop.f32.mrf.mxu0
        %v2036 = vadd.f32 %v1772, %v2035
        %v2037 = vpop.f32.mrf.mxu0
        %2038 = vmatprep.mubr.bf16.mxu0 0
        %2039 = vmatmul.mubr.bf16.gmra.mxu0 %v1742
        %v2040 = vpop.f32.mrf.mxu0
        %v2041 = vadd.f32 %v1772, %v2040
        %v2042 = vpop.f32.mrf.mxu0
        %v2043 = vpop.f32.mrf.mxu0
        %v2044 = vadd.f32 %v1772, %v2043
        %v2045 = vpop.f32.mrf.mxu0
        %2046 = vmatprep.mubr.bf16.mxu0 0
        %2047 = vmatmul.mubr.bf16.gmra.mxu0 %v1743
        %v2048 = vpop.f32.mrf.mxu0
        %v2049 = vadd.f32 %v1772, %v2048
        %v2050 = vpop.f32.mrf.mxu0
        %v2051 = vpop.f32.mrf.mxu0
        %v2052 = vadd.f32 %v1772, %v2051
        %v2053 = vpop.f32.mrf.mxu0
        %2054 = vmatprep.mubr.bf16.mxu0 0
        %2055 = vmatmul.mubr.bf16.gmra.mxu0 %v1744
        %v2056 = vpop.f32.mrf.mxu0
        %v2057 = vadd.f32 %v1772, %v2056
        %v2058 = vpop.f32.mrf.mxu0
        %v2059 = vpop.f32.mrf.mxu0
        %v2060 = vadd.f32 %v1772, %v2059
        %v2061 = vpop.f32.mrf.mxu0
        %2062 = vmatprep.mubr.bf16.mxu0 0
        %2063 = vmatmul.mubr.bf16.gmra.mxu0 %v1745
        %v2064 = vpop.f32.mrf.mxu0
        %v2065 = vadd.f32 %v1772, %v2064
        %v2066 = vpop.f32.mrf.mxu0
        %v2067 = vpop.f32.mrf.mxu0
        %v2068 = vadd.f32 %v1772, %v2067
        %v2069 = vpop.f32.mrf.mxu0
        %2070 = vmatprep.mubr.bf16.mxu0 0
        %2071 = vmatmul.mubr.bf16.gmra.mxu0 %v1746
        %v2072 = vpop.f32.mrf.mxu0
        %v2073 = vadd.f32 %v1772, %v2072
        %v2074 = vpop.f32.mrf.mxu0
        %v2075 = vpop.f32.mrf.mxu0
        %v2076 = vadd.f32 %v1772, %v2075
        %v2077 = vpop.f32.mrf.mxu0
        %2078 = vmatprep.mubr.bf16.mxu0 0
        %2079 = vmatmul.mubr.bf16.gmra.mxu0 %v1747
        %v2080 = vpop.f32.mrf.mxu0
        %v2081 = vadd.f32 %v1772, %v2080
        %v2082 = vpop.f32.mrf.mxu0
        %v2083 = vpop.f32.mrf.mxu0
        %v2084 = vadd.f32 %v1772, %v2083
        %v2085 = vpop.f32.mrf.mxu0
        %2086 = vmatprep.mubr.bf16.mxu0 0
        %2087 = vmatmul.mubr.bf16.gmra.mxu0 %v1748
        %v2088 = vpop.f32.mrf.mxu0
        %v2089 = vadd.f32 %v1772, %v2088
        %v2090 = vpop.f32.mrf.mxu0
        %v2091 = vpop.f32.mrf.mxu0
        %v2092 = vadd.f32 %v1772, %v2091
        %v2093 = vpop.f32.mrf.mxu0
        %2094 = vmatprep.mubr.bf16.mxu0 0
        %2095 = vmatmul.mubr.bf16.gmra.mxu0 %v1749
        %v2096 = vpop.f32.mrf.mxu0
        %v2097 = vadd.f32 %v1772, %v2096
        %v2098 = vpop.f32.mrf.mxu0
        %v2099 = vpop.f32.mrf.mxu0
        %v2100 = vadd.f32 %v1772, %v2099
        %v2101 = vpop.f32.mrf.mxu0
        %2102 = vmatprep.mubr.bf16.mxu0 0
        %2103 = vmatmul.mubr.bf16.gmra.mxu0 %v1750
        %v2104 = vpop.f32.mrf.mxu0
        %v2105 = vadd.f32 %v1772, %v2104
        %v2106 = vpop.f32.mrf.mxu0
        %v2107 = vpop.f32.mrf.mxu0
        %v2108 = vadd.f32 %v1772, %v2107
        %v2109 = vpop.f32.mrf.mxu0
        %2110 = vdwg.mxu0
        %2111 = vst [vmem:[%s336] sm:$0xff] %v1857
        %2112 = vst [vmem:[%s336 + $0x8] sm:$0xff] %v1860
        %2113 = vst [vmem:[%s336 + $0x10] sm:$0xff] %v1865
        %2114 = vst [vmem:[%s336 + $0x18] sm:$0xff] %v1868
        %2115 = vst [vmem:[%s336 + $0x20] sm:$0xff] %v1873
        %2116 = vst [vmem:[%s336 + $0x28] sm:$0xff] %v1876
        %2117 = vst [vmem:[%s336 + $0x30] sm:$0xff] %v1881
        %2118 = vst [vmem:[%s336 + $0x38] sm:$0xff] %v1884
        %2119 = vst [vmem:[%s336 + $0x40] sm:$0xff] %v1889
        %2120 = vst [vmem:[%s336 + $0x48] sm:$0xff] %v1892
        %2121 = vst [vmem:[%s336 + $0x50] sm:$0xff] %v1897
        %2122 = vst [vmem:[%s336 + $0x58] sm:$0xff] %v1900
        %2123 = vst [vmem:[%s336 + $0x60] sm:$0xff] %v1905
        %2124 = vst [vmem:[%s336 + $0x68] sm:$0xff] %v1908
        %2125 = vst [vmem:[%s336 + $0x70] sm:$0xff] %v1913
        %2126 = vst [vmem:[%s336 + $0x78] sm:$0xff] %v1916
        %2127 = vst [vmem:[%s336 + $0x80] sm:$0xff] %v1921
        %2128 = vst [vmem:[%s336 + $0x88] sm:$0xff] %v1924
        %2129 = vst [vmem:[%s336 + $0x90] sm:$0xff] %v1929
        %2130 = vst [vmem:[%s336 + $0x98] sm:$0xff] %v1932
        %2131 = vst [vmem:[%s336 + $0xa0] sm:$0xff] %v1937
        %2132 = vst [vmem:[%s336 + $0xa8] sm:$0xff] %v1940
        %2133 = vst [vmem:[%s336 + $0xb0] sm:$0xff] %v1945
        %2134 = vst [vmem:[%s336 + $0xb8] sm:$0xff] %v1948
        %2135 = vst [vmem:[%s336 + $0xc0] sm:$0xff] %v1953
        %2136 = vst [vmem:[%s336 + $0xc8] sm:$0xff] %v1956
        %2137 = vst [vmem:[%s336 + $0xd0] sm:$0xff] %v1961
        %2138 = vst [vmem:[%s336 + $0xd8] sm:$0xff] %v1964
        %2139 = vst [vmem:[%s336 + $0xe0] sm:$0xff] %v1969
        %2140 = vst [vmem:[%s336 + $0xe8] sm:$0xff] %v1972
        %2141 = vst [vmem:[%s336 + $0xf0] sm:$0xff] %v1977
        %2142 = vst [vmem:[%s336 + $0xf8] sm:$0xff] %v1980
        %2143 = vst [vmem:[%s336 + $0x100] sm:$0xff] %v1985
        %2144 = vst [vmem:[%s336 + $0x108] sm:$0xff] %v1988
        %2145 = vst [vmem:[%s336 + $0x110] sm:$0xff] %v1993
        %2146 = vst [vmem:[%s336 + $0x118] sm:$0xff] %v1996
        %2147 = vst [vmem:[%s336 + $0x120] sm:$0xff] %v2001
        %2148 = vst [vmem:[%s336 + $0x128] sm:$0xff] %v2004
        %2149 = vst [vmem:[%s336 + $0x130] sm:$0xff] %v2009
        %2150 = vst [vmem:[%s336 + $0x138] sm:$0xff] %v2012
        %2151 = vst [vmem:[%s336 + $0x140] sm:$0xff] %v2017
        %2152 = vst [vmem:[%s336 + $0x148] sm:$0xff] %v2020
        %2153 = vst [vmem:[%s336 + $0x150] sm:$0xff] %v2025
        %2154 = vst [vmem:[%s336 + $0x158] sm:$0xff] %v2028
        %2155 = vst [vmem:[%s336 + $0x160] sm:$0xff] %v2033
        %2156 = vst [vmem:[%s336 + $0x168] sm:$0xff] %v2036
        %2157 = vst [vmem:[%s336 + $0x170] sm:$0xff] %v2041
        %2158 = vst [vmem:[%s336 + $0x178] sm:$0xff] %v2044
        %2159 = vst [vmem:[%s336 + $0x180] sm:$0xff] %v2049
        %2160 = vst [vmem:[%s336 + $0x188] sm:$0xff] %v2052
        %2161 = vst [vmem:[%s336 + $0x190] sm:$0xff] %v2057
        %2162 = vst [vmem:[%s336 + $0x198] sm:$0xff] %v2060
        %2163 = vst [vmem:[%s336 + $0x1a0] sm:$0xff] %v2065
        %2164 = vst [vmem:[%s336 + $0x1a8] sm:$0xff] %v2068
        %2165 = vst [vmem:[%s336 + $0x1b0] sm:$0xff] %v2073
        %2166 = vst [vmem:[%s336 + $0x1b8] sm:$0xff] %v2076
        %2167 = vst [vmem:[%s336 + $0x1c0] sm:$0xff] %v2081
        %2168 = vst [vmem:[%s336 + $0x1c8] sm:$0xff] %v2084
        %2169 = vst [vmem:[%s336 + $0x1d0] sm:$0xff] %v2089
        %2170 = vst [vmem:[%s336 + $0x1d8] sm:$0xff] %v2092
        %2171 = vst [vmem:[%s336 + $0x1e0] sm:$0xff] %v2097
        %2172 = vst [vmem:[%s336 + $0x1e8] sm:$0xff] %v2100
        %2173 = vst [vmem:[%s336 + $0x1f0] sm:$0xff] %v2105
        %2174 = vst [vmem:[%s336 + $0x1f8] sm:$0xff] %v2108
        %s2175 = sand.u32 %s210, 1
        %s2176 = scalar_lea.sflag [#allocation4], %s2175
        %s2177 = sand.u32 %s210, 1
        %s2178 = smul.addr %s2177, 512
        %s2179 = scalar_lea.vmem [#allocation5], %s2178
        // Predicated region
        $region53: #{stylization_block.3} parent=47 // pred_check
          %p2180 = pneg %p220
        $region54: #{stylization_block.3} parent=47 // pred_check_branch
          %2182 = sbr.rel (%p2180) target = $region56
        $region55: #{stylization_block.3} parent=47 // pred_region
          %s2183 = smul.u32 64, %s29
          %s2185 = ssub.s32 8192, 8192
          %2186 = vsyncadd %s2176, %s2185
          %s2187 = smul.addr %s28, 64
          %s2188 = sadd.s32 %s2183, %s2187
          %s2189 = smul.addr %s2188, 128
          %s2190 = scalar_lea.hbm %s7, %s2189
          %s2191 = sshll.u32 %s2179, 4
          %s2192 = int_to_ptr.vmem [resolvable:$true] %s2191
          %2197 = dma.vmem_to_hbm [thread:$0]  %s2192, 8192, %s2190, %s2176, 128, 128, 8
        $region56: #{stylization_block.3} parent=47 // pred_fallthru
          _
      $region48: #{stylization_block.3} parent=5 // pred_fallthru
        _
      %p2198 = scmp.le.s32.totalorder 2, %s19
      // Predicated region
      $region57: #{stylization_block.3} parent=5 // pred_check
        %p2199 = pneg %p2198
      $region58: #{stylization_block.3} parent=5 // pred_check_branch
        %2201 = sbr.rel (%p2199) target = $region60
      $region59: #{stylization_block.3} parent=5 // pred_region
        %s2202 = ssub.s32 %s19, 2
        // Predicated region
        $region61: #{stylization_block.3} parent=59 // pred_check
          %p2203 = pneg %p226
        $region62: #{stylization_block.3} parent=59 // pred_check_branch
          %2205 = sbr.rel (%p2203) target = $region64
        $region63: #{stylization_block.3} parent=59 // pred_region
          %s2206 = sand.u32 %s211, 1
          %s2207 = scalar_lea.sflag [#allocation4], %s2206
          %s2208 = sand.u32 %s211, 1
          %s2209 = smul.addr %s2208, 512
          %s2210 = scalar_lea.vmem [#allocation5], %s2209
          %2211 = dma.done %s2207, 8192
        $region64: #{stylization_block.3} parent=59 // pred_fallthru
          _
      $region60: #{stylization_block.3} parent=5 // pred_fallthru
        _
    $region6: #{stylization_block.3} parent=1 // loop_footer
      %s23 = sadd.s32 1, %s19
    $region7: #{stylization_block.3} parent=1 // loop_footer_branch
      %18 = sbr.rel target = $region3
    $region8: #{stylization_block.3} parent=1 // loop_exit
      _
    %2212 = vsyncpa [#allocation3], 1
    %s2213 = scalar_lea.sflag [#allocation3], 1
    %2214 = vsyncpa %s2213, 1
    %2215 = vsyncpa [#allocation4], 1
    %s2216 = scalar_lea.sflag [#allocation4], 1
    %2217 = vsyncpa %s2216, 1

</llo_original>
